<compile_context>
chip_gen: v7x
topology: tpu7x:2x2x1
jax: 0.10.0
libtpu: 0.0.40
codegen_flags: <defaults>
</compile_context>

<pallas_src>
import math
import functools

import jax
import jax.numpy as jnp
import numpy as np
from jax import lax
from jax.experimental import pallas as pl
from jax.experimental.pallas import tpu as pltpu

# ---------------- model hyper-parameters (small, consistent with the module) --
B = 2            # batch
S = 8            # sequence length
D = 32           # num_hiddens == key/query/value size == norm_shape == ffn_num_input
NUM_HEADS = 4
DH = D // NUM_HEADS
FFN_H = 64       # ffn_num_hiddens
LN_EPS = 1e-5


def _layer_norm(x, gamma, beta):
    # gamma, beta: (1, D); PyTorch LayerNorm uses biased variance.
    mu = jnp.mean(x, axis=-1, keepdims=True)
    var = jnp.mean((x - mu) ** 2, axis=-1, keepdims=True)
    return (x - mu) * lax.rsqrt(var + LN_EPS) * gamma + beta


def encoder_block_kernel(valid_lens_ref,                 # SMEM (B,) int32 (scalar prefetch)
                         x_ref,                          # (B*S, D)
                         wqkv_ref,                       # (3H, D, DH) per-head Q|K|V
                         wo_ref,                         # (H, DH, D)  per-head W_o
                         g1_ref, be1_ref,                # (1, D) layernorm-1 gamma/beta
                         w1_ref, b1_ref,                 # (D, FFN_H), (1, FFN_H)
                         w2_ref, b2_ref,                 # (FFN_H, D), (1, D)
                         g2_ref, be2_ref,                # (1, D) layernorm-2 gamma/beta
                         out_ref,                        # (B*S, D)
                         *, batch, seq_len, num_heads):
    Bn, S_, H = batch, seq_len, num_heads
    N, Dm = x_ref.shape
    DHm = Dm // H
    G = 3 * H

    x = x_ref[...].astype(jnp.float32)                   # (N, D)

    # ---- per-head Q/K/V projection: ONE batched matmul, no post-matmul split --
    xg = jnp.broadcast_to(x[None, :, :], (G, N, Dm))     # built once, tiny
    qkvh = jnp.einsum("gnd,gde->gne", xg, wqkv_ref[...],
                      preferred_element_type=jnp.float32)          # (3H, N, DH)
    qh = qkvh[0:H]                                       # leading-dim slices: no lane movement
    kh = qkvh[H:2 * H]
    vh = qkvh[2 * H:3 * H]

    # ---- additive mask bias, built ONCE ---------------------------------------
    # allowed (same batch element, key < valid_len)  -> +0
    # same batch element but key >= valid_len        -> -1e6   (d2l masked_softmax)
    # different batch element                        -> -1e9   (strictly lower, so even
    #                                                           valid_len==0 rows never
    #                                                           attend across sequences)
    row = lax.broadcasted_iota(jnp.int32, (N, N), 0)
    col = lax.broadcasted_iota(jnp.int32, (N, N), 1)
    allowed = None
    same = None
    for bb in range(Bn):                                  # static unroll (B small)
        vlen = valid_lens_ref[bb]                         # scalar int32 from SMEM
        in_row = (row >= bb * S_) & (row < (bb + 1) * S_)
        in_col = (col >= bb * S_) & (col < (bb + 1) * S_)
        sb = in_row & in_col
        al = sb & (col < bb * S_ + vlen)
        same = sb if same is None else (same | sb)
        allowed = al if allowed is None else (allowed | al)
    bias = jnp.where(allowed, jnp.float32(0.0),
                     jnp.where(same, jnp.float32(-1e6), jnp.float32(-1e9)))

    # ---- batched scaled-dot-product attention (all heads at once) -------------
    scale = 1.0 / math.sqrt(DHm)
    scores = jnp.einsum("hqd,hkd->hqk", qh, kh,
                        preferred_element_type=jnp.float32) * scale        # (H, N, N)
    scores = scores + bias[None, :, :]
    m = jnp.max(scores, axis=-1, keepdims=True)
    e = jnp.exp(scores - m)
    s = jnp.sum(e, axis=-1, keepdims=True)
    p = e * pl.reciprocal(s, approx=True)                                  # EUP, not VPU divide
    oh = jnp.einsum("hqk,hkd->hqd", p, vh,
                    preferred_element_type=jnp.float32)                    # (H, N, DH)

    # ---- W_o folded into the head contraction (no concat of narrow head slices)
    attn = jnp.sum(jnp.einsum("hnd,hdo->hno", oh, wo_ref[...],
                              preferred_element_type=jnp.float32), axis=0)  # (N, D)

    # ---- AddNorm 1 (dropout = identity, eval mode) -----------------------------
    y = _layer_norm(attn + x, g1_ref[...], be1_ref[...])

    # ---- PositionWiseFFN -------------------------------------------------------
    h1 = jnp.maximum(
        jnp.dot(y, w1_ref[...], preferred_element_type=jnp.float32) + b1_ref[...], 0.0)
    f = jnp.dot(h1, w2_ref[...], preferred_element_type=jnp.float32) + b2_ref[...]

    # ---- AddNorm 2 -------------------------------------------------------------
    out_ref[...] = _layer_norm(f + y, g2_ref[...], be2_ref[...]).astype(out_ref.dtype)


def encoder_block(x, valid_lens, params):
    """x: (B, S, D) f32, valid_lens: (B,) int32."""
    Bx, Sx, Dx = x.shape
    assert Dx % NUM_HEADS == 0
    dh = Dx // NUM_HEADS
    rows = Bx * Sx

    p = params

    # Pre-split attention weights per head in the wrapper (one-time XLA reshapes).
    def per_head(w):                                      # (D, D) -> (H, D, DH)
        return jnp.transpose(w.reshape(Dx, NUM_HEADS, dh), (1, 0, 2))

    wqkv_h = jnp.concatenate(
        [per_head(p["wq"]), per_head(p["wk"]), per_head(p["wv"])], axis=0)  # (3H, D, DH)
    wo_h = p["wo"].reshape(NUM_HEADS, dh, Dx)                               # (H, DH, D)

    weight_args = (wqkv_h, wo_h,
                   p["g1"], p["be1"],
                   p["w1"], p["b1"], p["w2"], p["b2"],
                   p["g2"], p["be2"])

    def full_spec(arr):
        nd = arr.ndim
        return pl.BlockSpec(arr.shape, lambda i, vl, _nd=nd: (0,) * _nd)

    x2d = x.reshape(rows, Dx)        # flat (B*S, D) slab; free reshape in the wrapper

    kernel = functools.partial(encoder_block_kernel,
                               batch=Bx, seq_len=Sx, num_heads=NUM_HEADS)

    # Single grid step on all generations: at 16 rows of work, any batch split is
    # pure per-step overhead (and "parallel" does not shard across TensorCores).
    grid_spec = pltpu.PrefetchScalarGridSpec(
        num_scalar_prefetch=1,
        grid=(1,),
        in_specs=[pl.BlockSpec((rows, Dx), lambda i, vl: (0, 0))]
                 + [full_spec(w) for w in weight_args],
        out_specs=pl.BlockSpec((rows, Dx), lambda i, vl: (0, 0)),
    )

    out2d = pl.pallas_call(
        kernel,
        out_shape=jax.ShapeDtypeStruct((rows, Dx), x.dtype),
        grid_spec=grid_spec,
        compiler_params=pltpu.CompilerParams(dimension_semantics=("arbitrary",)),
    )(valid_lens, x2d, *weight_args)
    return out2d.reshape(Bx, Sx, Dx)


# ------------------------- pure-JAX reference (for a sanity check) -----------
def reference(x, valid_lens, p):
    q = x @ p["wq"]
    k = x @ p["wk"]
    v = x @ p["wv"]

    def split(t):  # (B,S,D) -> (B,H,S,DH)
        return t.reshape(B, S, NUM_HEADS, DH).transpose(0, 2, 1, 3)

    qh, kh, vh = split(q), split(k), split(v)
    scores = jnp.einsum("bhqd,bhkd->bhqk", qh, kh) / math.sqrt(DH)
    mask = jnp.arange(S)[None, None, None, :] < valid_lens[:, None, None, None]
    scores = jnp.where(mask, scores, -1e6)
    attn = jax.nn.softmax(scores, axis=-1)
    oh = jnp.einsum("bhqk,bhkd->bhqd", attn, vh)
    o = oh.transpose(0, 2, 1, 3).reshape(B, S, D) @ p["wo"]

    def ln(t, g, be):
        mu = jnp.mean(t, -1, keepdims=True)
        var = jnp.mean((t - mu) ** 2, -1, keepdims=True)
        return (t - mu) * lax.rsqrt(var + LN_EPS) * g + be

    y = ln(o + x, p["g1"], p["be1"])
    f = jnp.maximum(y @ p["w1"] + p["b1"], 0.0) @ p["w2"] + p["b2"]
    return ln(f + y, p["g2"], p["be2"])


if __name__ == "__main__":
    key = jax.random.PRNGKey(0)
    ks = jax.random.split(key, 8)

    params = {
        # attention projections, use_bias=False; stored as (in, out)
        "wq": jax.random.normal(ks[0], (D, D), jnp.float32) * 0.05,
        "wk": jax.random.normal(ks[1], (D, D), jnp.float32) * 0.05,
        "wv": jax.random.normal(ks[2], (D, D), jnp.float32) * 0.05,
        "wo": jax.random.normal(ks[3], (D, D), jnp.float32) * 0.05,
        # AddNorm1 LayerNorm params (PyTorch default init)
        "g1": jnp.ones((1, D), jnp.float32),
        "be1": jnp.zeros((1, D), jnp.float32),
        # FFN (dense1, dense2) with biases; weights stored as (in, out)
        "w1": jax.random.normal(ks[4], (D, FFN_H), jnp.float32) * 0.05,
        "b1": jax.random.normal(ks[5], (1, FFN_H), jnp.float32) * 0.05,
        "w2": jax.random.normal(ks[6], (FFN_H, D), jnp.float32) * 0.05,
        "b2": jax.random.normal(ks[7], (1, D), jnp.float32) * 0.05,
        # AddNorm2 LayerNorm params
        "g2": jnp.ones((1, D), jnp.float32),
        "be2": jnp.zeros((1, D), jnp.float32),
    }

    x = jax.random.normal(jax.random.PRNGKey(42), (B, S, D), jnp.float32)
    valid_lens = jnp.array([5, 8], dtype=jnp.int32)

    out = jax.block_until_ready(encoder_block(x, valid_lens, params))

    ref = reference(x, valid_lens, params)
    # Tolerance slack (2e-3) accounts only for the EUP approx-reciprocal in the
    # softmax normalization; matmuls/LayerNorm remain in f32.
    np.testing.assert_allclose(np.asarray(out), np.asarray(ref), rtol=2e-3, atol=2e-3)

    print("KERNEL_OK")
</pallas_src>

<mosaic_0001>
module attributes {stable_mosaic.version = 11 : i64} {
  func.func @encoder_block_kernel(%arg0: i32, %arg1: memref<2xi32, #tpu.memory_space<smem>>, %arg2: memref<16x32xf32, #tpu.memory_space<vmem>>, %arg3: memref<12x32x8xf32, #tpu.memory_space<vmem>>, %arg4: memref<4x8x32xf32, #tpu.memory_space<vmem>>, %arg5: memref<1x32xf32, #tpu.memory_space<vmem>>, %arg6: memref<1x32xf32, #tpu.memory_space<vmem>>, %arg7: memref<32x64xf32, #tpu.memory_space<vmem>>, %arg8: memref<1x64xf32, #tpu.memory_space<vmem>>, %arg9: memref<64x32xf32, #tpu.memory_space<vmem>>, %arg10: memref<1x32xf32, #tpu.memory_space<vmem>>, %arg11: memref<1x32xf32, #tpu.memory_space<vmem>>, %arg12: memref<1x32xf32, #tpu.memory_space<vmem>>, %arg13: memref<16x32xf32, #tpu.memory_space<vmem>>) attributes {dimension_semantics = [#tpu.dimension_semantics<arbitrary>], iteration_bounds = array<i64: 1>, scalar_prefetch = 1 : i64, scratch_operands = 0 : i64, tpu.core_type = #tpu.core_type<tc>, window_params = [{pipeline_mode = #tpu.pipeline_mode<synchronous>, transform_indices = @transform_0, window_bounds = array<i64: 16, 32>}, {pipeline_mode = #tpu.pipeline_mode<synchronous>, transform_indices = @transform_1, window_bounds = array<i64: 12, 32, 8>}, {pipeline_mode = #tpu.pipeline_mode<synchronous>, transform_indices = @transform_2, window_bounds = array<i64: 4, 8, 32>}, {pipeline_mode = #tpu.pipeline_mode<synchronous>, transform_indices = @transform_3, window_bounds = array<i64: 1, 32>}, {pipeline_mode = #tpu.pipeline_mode<synchronous>, transform_indices = @transform_4, window_bounds = array<i64: 1, 32>}, {pipeline_mode = #tpu.pipeline_mode<synchronous>, transform_indices = @transform_5, window_bounds = array<i64: 32, 64>}, {pipeline_mode = #tpu.pipeline_mode<synchronous>, transform_indices = @transform_6, window_bounds = array<i64: 1, 64>}, {pipeline_mode = #tpu.pipeline_mode<synchronous>, transform_indices = @transform_7, window_bounds = array<i64: 64, 32>}, {pipeline_mode = #tpu.pipeline_mode<synchronous>, transform_indices = @transform_8, window_bounds = array<i64: 1, 32>}, {pipeline_mode = #tpu.pipeline_mode<synchronous>, transform_indices = @transform_9, window_bounds = array<i64: 1, 32>}, {pipeline_mode = #tpu.pipeline_mode<synchronous>, transform_indices = @transform_10, window_bounds = array<i64: 1, 32>}, {pipeline_mode = #tpu.pipeline_mode<synchronous>, transform_indices = @transform_11, window_bounds = array<i64: 16, 32>}]} {
    %c0 = arith.constant 0 : index
    %c0_0 = arith.constant 0 : index
    %0 = vector.load %arg2[%c0, %c0_0] : memref<16x32xf32, #tpu.memory_space<vmem>>, vector<16x32xf32>
    %1 = vector.shape_cast %0 : vector<16x32xf32> to vector<1x16x32xf32>
    %2 = vector.shape_cast %1 : vector<1x16x32xf32> to vector<1x16x32xf32>
    %3 = vector.broadcast %2 : vector<1x16x32xf32> to vector<12x16x32xf32>
    %c0_1 = arith.constant 0 : index
    %c0_2 = arith.constant 0 : index
    %c0_3 = arith.constant 0 : index
    %4 = vector.load %arg3[%c0_1, %c0_2, %c0_3] : memref<12x32x8xf32, #tpu.memory_space<vmem>>, vector<12x32x8xf32>
    "tpu.trace_start"() <{level = 10 : i32, message = "gnd,gde->gne"}> : () -> ()
    %cst = arith.constant dense<0.000000e+00> : vector<12x16x8xf32>
    %5 = tpu.matmul %3, %4, %cst {dimension_numbers = #tpu.dot_dimension_numbers<[2], [1], [1], [2], [0, 0, 0, 1, 1, 2], [0], [0]>} : vector<12x16x32xf32>, vector<12x32x8xf32>, vector<12x16x8xf32> -> vector<12x16x8xf32>
    "tpu.trace_stop"() : () -> ()
    %6 = vector.extract_strided_slice %5 {offsets = [0, 0, 0], sizes = [4, 16, 8], strides = [1, 1, 1]} : vector<12x16x8xf32> to vector<4x16x8xf32>
    %7 = vector.extract_strided_slice %5 {offsets = [4, 0, 0], sizes = [4, 16, 8], strides = [1, 1, 1]} : vector<12x16x8xf32> to vector<4x16x8xf32>
    %8 = vector.extract_strided_slice %5 {offsets = [8, 0, 0], sizes = [4, 16, 8], strides = [1, 1, 1]} : vector<12x16x8xf32> to vector<4x16x8xf32>
    %9 = tpu.iota {dimensions = array<i32: 0>} : vector<16x16xi32>
    %10 = tpu.iota {dimensions = array<i32: 1>} : vector<16x16xi32>
    %c0_4 = arith.constant 0 : index
    %11 = memref.load %arg1[%c0_4] : memref<2xi32, #tpu.memory_space<smem>>
    %c0_i32 = arith.constant 0 : i32
    %12 = vector.broadcast %c0_i32 : i32 to vector<16x16xi32>
    %13 = arith.cmpi sge, %9, %12 : vector<16x16xi32>
    %c8_i32 = arith.constant 8 : i32
    %14 = vector.broadcast %c8_i32 : i32 to vector<16x16xi32>
    %15 = arith.cmpi slt, %9, %14 : vector<16x16xi32>
    %16 = arith.andi %13, %15 : vector<16x16xi1>
    %c0_i32_5 = arith.constant 0 : i32
    %17 = vector.broadcast %c0_i32_5 : i32 to vector<16x16xi32>
    %18 = arith.cmpi sge, %10, %17 : vector<16x16xi32>
    %c8_i32_6 = arith.constant 8 : i32
    %19 = vector.broadcast %c8_i32_6 : i32 to vector<16x16xi32>
    %20 = arith.cmpi slt, %10, %19 : vector<16x16xi32>
    %21 = arith.andi %18, %20 : vector<16x16xi1>
    %22 = arith.andi %16, %21 : vector<16x16xi1>
    %c0_i32_7 = arith.constant 0 : i32
    %23 = arith.addi %c0_i32_7, %11 : i32
    %24 = vector.broadcast %23 : i32 to vector<16x16xi32>
    %25 = arith.cmpi slt, %10, %24 : vector<16x16xi32>
    %26 = arith.andi %22, %25 : vector<16x16xi1>
    %c1 = arith.constant 1 : index
    %27 = memref.load %arg1[%c1] : memref<2xi32, #tpu.memory_space<smem>>
    %c8_i32_8 = arith.constant 8 : i32
    %28 = vector.broadcast %c8_i32_8 : i32 to vector<16x16xi32>
    %29 = arith.cmpi sge, %9, %28 : vector<16x16xi32>
    %c16_i32 = arith.constant 16 : i32
    %30 = vector.broadcast %c16_i32 : i32 to vector<16x16xi32>
    %31 = arith.cmpi slt, %9, %30 : vector<16x16xi32>
    %32 = arith.andi %29, %31 : vector<16x16xi1>
    %c8_i32_9 = arith.constant 8 : i32
    %33 = vector.broadcast %c8_i32_9 : i32 to vector<16x16xi32>
    %34 = arith.cmpi sge, %10, %33 : vector<16x16xi32>
    %c16_i32_10 = arith.constant 16 : i32
    %35 = vector.broadcast %c16_i32_10 : i32 to vector<16x16xi32>
    %36 = arith.cmpi slt, %10, %35 : vector<16x16xi32>
    %37 = arith.andi %34, %36 : vector<16x16xi1>
    %38 = arith.andi %32, %37 : vector<16x16xi1>
    %c8_i32_11 = arith.constant 8 : i32
    %39 = arith.addi %c8_i32_11, %27 : i32
    %40 = vector.broadcast %39 : i32 to vector<16x16xi32>
    %41 = arith.cmpi slt, %10, %40 : vector<16x16xi32>
    %42 = arith.andi %38, %41 : vector<16x16xi1>
    %43 = arith.ori %22, %38 : vector<16x16xi1>
    %44 = arith.ori %26, %42 : vector<16x16xi1>
    %cst_12 = arith.constant -1.000000e+06 : f32
    %cst_13 = arith.constant -1.000000e+09 : f32
    %45 = vector.broadcast %cst_12 : f32 to vector<16x16xf32>
    %46 = vector.broadcast %cst_13 : f32 to vector<16x16xf32>
    %47 = arith.select %43, %45, %46 : vector<16x16xi1>, vector<16x16xf32>
    %cst_14 = arith.constant 0.000000e+00 : f32
    %48 = vector.broadcast %cst_14 : f32 to vector<16x16xf32>
    %49 = arith.select %44, %48, %47 : vector<16x16xi1>, vector<16x16xf32>
    "tpu.trace_start"() <{level = 10 : i32, message = "hqd,hkd->hqk"}> : () -> ()
    %cst_15 = arith.constant dense<0.000000e+00> : vector<4x16x16xf32>
    %50 = tpu.matmul %6, %7, %cst_15 {dimension_numbers = #tpu.dot_dimension_numbers<[2], [2], [1], [1], [0, 0, 0, 1, 1, 1], [0], [0]>} : vector<4x16x8xf32>, vector<4x16x8xf32>, vector<4x16x16xf32> -> vector<4x16x16xf32>
    "tpu.trace_stop"() : () -> ()
    %cst_16 = arith.constant 0.353553385 : f32
    %51 = vector.broadcast %cst_16 : f32 to vector<4x16x16xf32>
    %52 = arith.mulf %50, %51 : vector<4x16x16xf32>
    %53 = vector.shape_cast %49 : vector<16x16xf32> to vector<1x16x16xf32>
    %54 = vector.broadcast %53 : vector<1x16x16xf32> to vector<4x16x16xf32>
    %55 = arith.addf %52, %54 : vector<4x16x16xf32>
    %cst_17 = arith.constant dense<0xFF800000> : vector<4x16xf32>
    %56 = vector.multi_reduction <maximumf>, %55, %cst_17 [2] : vector<4x16x16xf32> to vector<4x16xf32>
    %57 = vector.shape_cast %56 : vector<4x16xf32> to vector<4x16x1xf32>
    %58 = vector.broadcast %57 : vector<4x16x1xf32> to vector<4x16x16xf32>
    %59 = arith.subf %55, %58 : vector<4x16x16xf32>
    %60 = math.exp %59 : vector<4x16x16xf32>
    %cst_18 = arith.constant dense<0.000000e+00> : vector<4x16xf32>
    %61 = vector.multi_reduction <add>, %60, %cst_18 [2] : vector<4x16x16xf32> to vector<4x16xf32>
    %62 = vector.shape_cast %61 : vector<4x16xf32> to vector<4x16x1xf32>
    %63 = tpu.reciprocal %62 {approx = true} : vector<4x16x1xf32> -> vector<4x16x1xf32>
    %64 = vector.broadcast %63 : vector<4x16x1xf32> to vector<4x16x16xf32>
    %65 = arith.mulf %60, %64 : vector<4x16x16xf32>
    "tpu.trace_start"() <{level = 10 : i32, message = "hqk,hkd->hqd"}> : () -> ()
    %cst_19 = arith.constant dense<0.000000e+00> : vector<4x16x8xf32>
    %66 = tpu.matmul %65, %8, %cst_19 {dimension_numbers = #tpu.dot_dimension_numbers<[2], [1], [1], [2], [0, 0, 0, 1, 1, 2], [0], [0]>} : vector<4x16x16xf32>, vector<4x16x8xf32>, vector<4x16x8xf32> -> vector<4x16x8xf32>
    "tpu.trace_stop"() : () -> ()
    %c0_20 = arith.constant 0 : index
    %c0_21 = arith.constant 0 : index
    %c0_22 = arith.constant 0 : index
    %67 = vector.load %arg4[%c0_20, %c0_21, %c0_22] : memref<4x8x32xf32, #tpu.memory_space<vmem>>, vector<4x8x32xf32>
    "tpu.trace_start"() <{level = 10 : i32, message = "hnd,hdo->hno"}> : () -> ()
    %cst_23 = arith.constant dense<0.000000e+00> : vector<4x16x32xf32>
    %68 = tpu.matmul %66, %67, %cst_23 {dimension_numbers = #tpu.dot_dimension_numbers<[2], [1], [1], [2], [0, 0, 0, 1, 1, 2], [0], [0]>} : vector<4x16x8xf32>, vector<4x8x32xf32>, vector<4x16x32xf32> -> vector<4x16x32xf32>
    "tpu.trace_stop"() : () -> ()
    %cst_24 = arith.constant dense<0.000000e+00> : vector<16x32xf32>
    %69 = vector.multi_reduction <add>, %68, %cst_24 [0] : vector<4x16x32xf32> to vector<16x32xf32>
    %70 = arith.addf %69, %0 : vector<16x32xf32>
    %c0_25 = arith.constant 0 : index
    %c0_26 = arith.constant 0 : index
    %71 = vector.load %arg5[%c0_25, %c0_26] : memref<1x32xf32, #tpu.memory_space<vmem>>, vector<1x32xf32>
    %c0_27 = arith.constant 0 : index
    %c0_28 = arith.constant 0 : index
    %72 = vector.load %arg6[%c0_27, %c0_28] : memref<1x32xf32, #tpu.memory_space<vmem>>, vector<1x32xf32>
    %cst_29 = arith.constant dense<0.000000e+00> : vector<16xf32>
    %73 = vector.multi_reduction <add>, %70, %cst_29 [1] : vector<16x32xf32> to vector<16xf32>
    %74 = vector.shape_cast %73 : vector<16xf32> to vector<16x1xf32>
    %cst_30 = arith.constant 3.200000e+01 : f32
    %75 = vector.broadcast %cst_30 : f32 to vector<16x1xf32>
    %76 = arith.divf %74, %75 : vector<16x1xf32>
    %77 = vector.broadcast %76 : vector<16x1xf32> to vector<16x32xf32>
    %78 = arith.subf %70, %77 : vector<16x32xf32>
    %79 = arith.mulf %78, %78 : vector<16x32xf32>
    %cst_31 = arith.constant dense<0.000000e+00> : vector<16xf32>
    %80 = vector.multi_reduction <add>, %79, %cst_31 [1] : vector<16x32xf32> to vector<16xf32>
    %81 = vector.shape_cast %80 : vector<16xf32> to vector<16x1xf32>
    %cst_32 = arith.constant 3.200000e+01 : f32
    %82 = vector.broadcast %cst_32 : f32 to vector<16x1xf32>
    %83 = arith.divf %81, %82 : vector<16x1xf32>
    %84 = vector.broadcast %76 : vector<16x1xf32> to vector<16x32xf32>
    %85 = arith.subf %70, %84 : vector<16x32xf32>
    %cst_33 = arith.constant 9.99999974E-6 : f32
    %86 = vector.broadcast %cst_33 : f32 to vector<16x1xf32>
    %87 = arith.addf %83, %86 : vector<16x1xf32>
    %88 = math.rsqrt %87 : vector<16x1xf32>
    %89 = vector.broadcast %88 : vector<16x1xf32> to vector<16x32xf32>
    %90 = arith.mulf %85, %89 : vector<16x32xf32>
    %91 = vector.broadcast %71 : vector<1x32xf32> to vector<16x32xf32>
    %92 = arith.mulf %90, %91 : vector<16x32xf32>
    %93 = vector.broadcast %72 : vector<1x32xf32> to vector<16x32xf32>
    %94 = arith.addf %92, %93 : vector<16x32xf32>
    %c0_34 = arith.constant 0 : index
    %c0_35 = arith.constant 0 : index
    %95 = vector.load %arg7[%c0_34, %c0_35] : memref<32x64xf32, #tpu.memory_space<vmem>>, vector<32x64xf32>
    %cst_36 = arith.constant dense<0.000000e+00> : vector<16x64xf32>
    %96 = tpu.matmul %94, %95, %cst_36 {dimension_numbers = #tpu.dot_dimension_numbers<[1], [0], [0], [1], [0, 0, 1, 1], [], []>} : vector<16x32xf32>, vector<32x64xf32>, vector<16x64xf32> -> vector<16x64xf32>
    %c0_37 = arith.constant 0 : index
    %c0_38 = arith.constant 0 : index
    %97 = vector.load %arg8[%c0_37, %c0_38] : memref<1x64xf32, #tpu.memory_space<vmem>>, vector<1x64xf32>
    %98 = vector.broadcast %97 : vector<1x64xf32> to vector<16x64xf32>
    %99 = arith.addf %96, %98 : vector<16x64xf32>
    %cst_39 = arith.constant 0.000000e+00 : f32
    %100 = vector.broadcast %cst_39 : f32 to vector<16x64xf32>
    %101 = arith.maximumf %99, %100 : vector<16x64xf32>
    %c0_40 = arith.constant 0 : index
    %c0_41 = arith.constant 0 : index
    %102 = vector.load %arg9[%c0_40, %c0_41] : memref<64x32xf32, #tpu.memory_space<vmem>>, vector<64x32xf32>
    %cst_42 = arith.constant dense<0.000000e+00> : vector<16x32xf32>
    %103 = tpu.matmul %101, %102, %cst_42 {dimension_numbers = #tpu.dot_dimension_numbers<[1], [0], [0], [1], [0, 0, 1, 1], [], []>} : vector<16x64xf32>, vector<64x32xf32>, vector<16x32xf32> -> vector<16x32xf32>
    %c0_43 = arith.constant 0 : index
    %c0_44 = arith.constant 0 : index
    %104 = vector.load %arg10[%c0_43, %c0_44] : memref<1x32xf32, #tpu.memory_space<vmem>>, vector<1x32xf32>
    %105 = vector.broadcast %104 : vector<1x32xf32> to vector<16x32xf32>
    %106 = arith.addf %103, %105 : vector<16x32xf32>
    %107 = arith.addf %106, %94 : vector<16x32xf32>
    %c0_45 = arith.constant 0 : index
    %c0_46 = arith.constant 0 : index
    %108 = vector.load %arg11[%c0_45, %c0_46] : memref<1x32xf32, #tpu.memory_space<vmem>>, vector<1x32xf32>
    %c0_47 = arith.constant 0 : index
    %c0_48 = arith.constant 0 : index
    %109 = vector.load %arg12[%c0_47, %c0_48] : memref<1x32xf32, #tpu.memory_space<vmem>>, vector<1x32xf32>
    %cst_49 = arith.constant dense<0.000000e+00> : vector<16xf32>
    %110 = vector.multi_reduction <add>, %107, %cst_49 [1] : vector<16x32xf32> to vector<16xf32>
    %111 = vector.shape_cast %110 : vector<16xf32> to vector<16x1xf32>
    %cst_50 = arith.constant 3.200000e+01 : f32
    %112 = vector.broadcast %cst_50 : f32 to vector<16x1xf32>
    %113 = arith.divf %111, %112 : vector<16x1xf32>
    %114 = vector.broadcast %113 : vector<16x1xf32> to vector<16x32xf32>
    %115 = arith.subf %107, %114 : vector<16x32xf32>
    %116 = arith.mulf %115, %115 : vector<16x32xf32>
    %cst_51 = arith.constant dense<0.000000e+00> : vector<16xf32>
    %117 = vector.multi_reduction <add>, %116, %cst_51 [1] : vector<16x32xf32> to vector<16xf32>
    %118 = vector.shape_cast %117 : vector<16xf32> to vector<16x1xf32>
    %cst_52 = arith.constant 3.200000e+01 : f32
    %119 = vector.broadcast %cst_52 : f32 to vector<16x1xf32>
    %120 = arith.divf %118, %119 : vector<16x1xf32>
    %121 = vector.broadcast %113 : vector<16x1xf32> to vector<16x32xf32>
    %122 = arith.subf %107, %121 : vector<16x32xf32>
    %cst_53 = arith.constant 9.99999974E-6 : f32
    %123 = vector.broadcast %cst_53 : f32 to vector<16x1xf32>
    %124 = arith.addf %120, %123 : vector<16x1xf32>
    %125 = math.rsqrt %124 : vector<16x1xf32>
    %126 = vector.broadcast %125 : vector<16x1xf32> to vector<16x32xf32>
    %127 = arith.mulf %122, %126 : vector<16x32xf32>
    %128 = vector.broadcast %108 : vector<1x32xf32> to vector<16x32xf32>
    %129 = arith.mulf %127, %128 : vector<16x32xf32>
    %130 = vector.broadcast %109 : vector<1x32xf32> to vector<16x32xf32>
    %131 = arith.addf %129, %130 : vector<16x32xf32>
    %c0_54 = arith.constant 0 : index
    %c0_55 = arith.constant 0 : index
    %132 = vector.load %arg13[%c0_54, %c0_55] : memref<16x32xf32, #tpu.memory_space<vmem>>, vector<16x32xf32>
    tpu.vector_store %arg13[%c0_54, %c0_55], %131 {strides = array<i32>} : memref<16x32xf32, #tpu.memory_space<vmem>>, vector<16x32xf32>,
    return
  }
  func.func @transform_0(%arg0: i32, %arg1: memref<2xi32, #tpu.memory_space<smem>>) -> (i32, i32) {
    %c0_i32 = arith.constant 0 : i32
    %c0_i32_0 = arith.constant 0 : i32
    %c0_i32_1 = arith.constant 0 : i32
    return %c0_i32, %c0_i32_0 : i32, i32
  }
  func.func @transform_1(%arg0: i32, %arg1: memref<2xi32, #tpu.memory_space<smem>>) -> (i32, i32, i32) {
    %c0_i32 = arith.constant 0 : i32
    %c0_i32_0 = arith.constant 0 : i32
    %c0_i32_1 = arith.constant 0 : i32
    %c0_i32_2 = arith.constant 0 : i32
    return %c0_i32, %c0_i32_0, %c0_i32_1 : i32, i32, i32
  }
  func.func @transform_2(%arg0: i32, %arg1: memref<2xi32, #tpu.memory_space<smem>>) -> (i32, i32, i32) {
    %c0_i32 = arith.constant 0 : i32
    %c0_i32_0 = arith.constant 0 : i32
    %c0_i32_1 = arith.constant 0 : i32
    %c0_i32_2 = arith.constant 0 : i32
    return %c0_i32, %c0_i32_0, %c0_i32_1 : i32, i32, i32
  }
  func.func @transform_3(%arg0: i32, %arg1: memref<2xi32, #tpu.memory_space<smem>>) -> (i32, i32) {
    %c0_i32 = arith.constant 0 : i32
    %c0_i32_0 = arith.constant 0 : i32
    %c0_i32_1 = arith.constant 0 : i32
    return %c0_i32, %c0_i32_0 : i32, i32
  }
  func.func @transform_4(%arg0: i32, %arg1: memref<2xi32, #tpu.memory_space<smem>>) -> (i32, i32) {
    %c0_i32 = arith.constant 0 : i32
    %c0_i32_0 = arith.constant 0 : i32
    %c0_i32_1 = arith.constant 0 : i32
    return %c0_i32, %c0_i32_0 : i32, i32
  }
  func.func @transform_5(%arg0: i32, %arg1: memref<2xi32, #tpu.memory_space<smem>>) -> (i32, i32) {
    %c0_i32 = arith.constant 0 : i32
    %c0_i32_0 = arith.constant 0 : i32
    %c0_i32_1 = arith.constant 0 : i32
    return %c0_i32, %c0_i32_0 : i32, i32
  }
  func.func @transform_6(%arg0: i32, %arg1: memref<2xi32, #tpu.memory_space<smem>>) -> (i32, i32) {
    %c0_i32 = arith.constant 0 : i32
    %c0_i32_0 = arith.constant 0 : i32
    %c0_i32_1 = arith.constant 0 : i32
    return %c0_i32, %c0_i32_0 : i32, i32
  }
  func.func @transform_7(%arg0: i32, %arg1: memref<2xi32, #tpu.memory_space<smem>>) -> (i32, i32) {
    %c0_i32 = arith.constant 0 : i32
    %c0_i32_0 = arith.constant 0 : i32
    %c0_i32_1 = arith.constant 0 : i32
    return %c0_i32, %c0_i32_0 : i32, i32
  }
  func.func @transform_8(%arg0: i32, %arg1: memref<2xi32, #tpu.memory_space<smem>>) -> (i32, i32) {
    %c0_i32 = arith.constant 0 : i32
    %c0_i32_0 = arith.constant 0 : i32
    %c0_i32_1 = arith.constant 0 : i32
    return %c0_i32, %c0_i32_0 : i32, i32
  }
  func.func @transform_9(%arg0: i32, %arg1: memref<2xi32, #tpu.memory_space<smem>>) -> (i32, i32) {
    %c0_i32 = arith.constant 0 : i32
    %c0_i32_0 = arith.constant 0 : i32
    %c0_i32_1 = arith.constant 0 : i32
    return %c0_i32, %c0_i32_0 : i32, i32
  }
  func.func @transform_10(%arg0: i32, %arg1: memref<2xi32, #tpu.memory_space<smem>>) -> (i32, i32) {
    %c0_i32 = arith.constant 0 : i32
    %c0_i32_0 = arith.constant 0 : i32
    %c0_i32_1 = arith.constant 0 : i32
    return %c0_i32, %c0_i32_0 : i32, i32
  }
  func.func @transform_11(%arg0: i32, %arg1: memref<2xi32, #tpu.memory_space<smem>>) -> (i32, i32) {
    %c0_i32 = arith.constant 0 : i32
    %c0_i32_0 = arith.constant 0 : i32
    %c0_i32_1 = arith.constant 0 : i32
    return %c0_i32, %c0_i32_0 : i32, i32
  }
}

</mosaic_0001>

<llo_original>
// kernel: tpu_custom_call.1
$region0: #{tpu_custom_call.1}
  #allocation0 [shape = 'u32[]', space=smem, size = 0x4, offset = 0x4, fixed_abs, tag = 'smem constant byte address 0x4 - core index']
  #allocation1 [shape = 'u32[144,128]{1,0:T(1,128)}', space=vmem, size = 0x12000, scoped, tag = 'internal scratch']
  #allocation2 [shape = 's32[1]{0}', space=sflag, size = 0x4, scoped, tag = 'scoped memory for tpu_custom_call.1']
  #allocation3 [shape = 'u8[512]{0}', space=smem, size = 0x200, scoped, tag = 'prefetched SMEM operand 0']
  %s0 = inlined_call_operand.vmem [shape: s32[2], index: 0, kind: input, shape index: {}]
  %s1 = inlined_call_operand.vmem [shape: f32[16,32], index: 1, kind: input, shape index: {}]
  %s2 = inlined_call_operand.vmem [shape: f32[12,32,8], index: 2, kind: input, shape index: {}]
  %s3 = inlined_call_operand.vmem [shape: f32[4,8,32], index: 3, kind: input, shape index: {}]
  %s4 = inlined_call_operand.vmem [shape: f32[1,32], index: 4, kind: input, shape index: {}]
  %s5 = inlined_call_operand.vmem [shape: f32[1,32], index: 5, kind: input, shape index: {}]
  %s6 = inlined_call_operand.vmem [shape: f32[32,64], index: 6, kind: input, shape index: {}]
  %s7 = inlined_call_operand.vmem [shape: f32[1,64], index: 7, kind: input, shape index: {}]
  %s8 = inlined_call_operand.vmem [shape: f32[64,32], index: 8, kind: input, shape index: {}]
  %s9 = inlined_call_operand.vmem [shape: f32[1,32], index: 9, kind: input, shape index: {}]
  %s10 = inlined_call_operand.vmem [shape: f32[1,32], index: 10, kind: input, shape index: {}]
  %s11 = inlined_call_operand.vmem [shape: f32[1,32], index: 11, kind: input, shape index: {}]
  %s12 = inlined_call_operand.hbm [shape: f32[16,32], index: 12, kind: output, shape index: {}]
  %s13 = sld [smem:[#allocation0]]
  $region54: #{tpu_custom_call.1} parent=0
    _
  %s15 = ssub.s32 1, %s13
  %s16 = scalar_select 0, %s15, %s13
  %s17 = sshll.u32 %s0, 4
  %s18 = int_to_ptr.vmem [resolvable:$true] %s17
  %20 = dma.vmem_to_smem %s18, 16, [#allocation3], [#allocation2]
  %21 = dma.done [#allocation2], 16
  %22 = sfence
  $region1: #{tpu_custom_call.1} parent=0
    #allocation4 [shape = 'u8[8192]{0}', space=vmem, size = 0x2000, scoped, tag = 'output window, operand 0, single buffered']
    #allocation5 [shape = 's32[1]{0}', space=sflag, size = 0x4, scoped, tag = 'scoped memory for tpu_custom_call.1']
    %23 = vsyncpa [#allocation5], 0
    // Predicated region
    $region2: #{tpu_custom_call.1} parent=1 // pred_check
      _
    $region3: #{tpu_custom_call.1} parent=1 // pred_check_branch
      %25 = sbr.rel (0) target = $region5
    $region4: #{tpu_custom_call.1} parent=1 // pred_region
      _
    $region5: #{tpu_custom_call.1} parent=1 // pred_fallthru
      _
    // Predicated region
    $region6: #{tpu_custom_call.1} parent=1 // pred_check
      _
    $region7: #{tpu_custom_call.1} parent=1 // pred_check_branch
      %27 = sbr.rel (0) target = $region9
    $region8: #{tpu_custom_call.1} parent=1 // pred_region
      _
    $region9: #{tpu_custom_call.1} parent=1 // pred_fallthru
      _
    // Predicated region
    $region10: #{tpu_custom_call.1} parent=1 // pred_check
      _
    $region11: #{tpu_custom_call.1} parent=1 // pred_check_branch
      %29 = sbr.rel (0) target = $region13
    $region12: #{tpu_custom_call.1} parent=1 // pred_region
      _
    $region13: #{tpu_custom_call.1} parent=1 // pred_fallthru
      _
    // Predicated region
    $region14: #{tpu_custom_call.1} parent=1 // pred_check
      _
    $region15: #{tpu_custom_call.1} parent=1 // pred_check_branch
      %31 = sbr.rel (0) target = $region17
    $region16: #{tpu_custom_call.1} parent=1 // pred_region
      _
    $region17: #{tpu_custom_call.1} parent=1 // pred_fallthru
      _
    // Predicated region
    $region18: #{tpu_custom_call.1} parent=1 // pred_check
      _
    $region19: #{tpu_custom_call.1} parent=1 // pred_check_branch
      %33 = sbr.rel (0) target = $region21
    $region20: #{tpu_custom_call.1} parent=1 // pred_region
      _
    $region21: #{tpu_custom_call.1} parent=1 // pred_fallthru
      _
    // Predicated region
    $region22: #{tpu_custom_call.1} parent=1 // pred_check
      _
    $region23: #{tpu_custom_call.1} parent=1 // pred_check_branch
      %35 = sbr.rel (0) target = $region25
    $region24: #{tpu_custom_call.1} parent=1 // pred_region
      _
    $region25: #{tpu_custom_call.1} parent=1 // pred_fallthru
      _
    // Predicated region
    $region26: #{tpu_custom_call.1} parent=1 // pred_check
      _
    $region27: #{tpu_custom_call.1} parent=1 // pred_check_branch
      %37 = sbr.rel (0) target = $region29
    $region28: #{tpu_custom_call.1} parent=1 // pred_region
      _
    $region29: #{tpu_custom_call.1} parent=1 // pred_fallthru
      _
    // Predicated region
    $region30: #{tpu_custom_call.1} parent=1 // pred_check
      _
    $region31: #{tpu_custom_call.1} parent=1 // pred_check_branch
      %39 = sbr.rel (0) target = $region33
    $region32: #{tpu_custom_call.1} parent=1 // pred_region
      _
    $region33: #{tpu_custom_call.1} parent=1 // pred_fallthru
      _
    // Predicated region
    $region34: #{tpu_custom_call.1} parent=1 // pred_check
      _
    $region35: #{tpu_custom_call.1} parent=1 // pred_check_branch
      %41 = sbr.rel (0) target = $region37
    $region36: #{tpu_custom_call.1} parent=1 // pred_region
      _
    $region37: #{tpu_custom_call.1} parent=1 // pred_fallthru
      _
    // Predicated region
    $region38: #{tpu_custom_call.1} parent=1 // pred_check
      _
    $region39: #{tpu_custom_call.1} parent=1 // pred_check_branch
      %43 = sbr.rel (0) target = $region41
    $region40: #{tpu_custom_call.1} parent=1 // pred_region
      _
    $region41: #{tpu_custom_call.1} parent=1 // pred_fallthru
      _
    // Predicated region
    $region42: #{tpu_custom_call.1} parent=1 // pred_check
      _
    $region43: #{tpu_custom_call.1} parent=1 // pred_check_branch
      %45 = sbr.rel (0) target = $region45
    $region44: #{tpu_custom_call.1} parent=1 // pred_region
      _
    $region45: #{tpu_custom_call.1} parent=1 // pred_fallthru
      _
    %v46 = vld [vmem:[%s1] sm:$0xff]
    %v47 = vld [vmem:[%s1 + $0x8] sm:$0xff]
    %v48 = vld [vmem:[%s2] sm:$0xff]
    %v49 = vld [vmem:[%s2 + $0x8] sm:$0xff]
    %v50 = vld [vmem:[%s2 + $0x10] sm:$0xff]
    %v51 = vld [vmem:[%s2 + $0x18] sm:$0xff]
    %v52 = vld [vmem:[%s2 + $0x20] sm:$0xff]
    %v53 = vld [vmem:[%s2 + $0x28] sm:$0xff]
    %v54 = vld [vmem:[%s2 + $0x30] sm:$0xff]
    %v55 = vld [vmem:[%s2 + $0x38] sm:$0xff]
    %v56 = vld [vmem:[%s2 + $0x40] sm:$0xff]
    %v57 = vld [vmem:[%s2 + $0x48] sm:$0xff]
    %v58 = vld [vmem:[%s2 + $0x50] sm:$0xff]
    %v59 = vld [vmem:[%s2 + $0x58] sm:$0xff]
    %v60 = vld [vmem:[%s2 + $0x60] sm:$0xff]
    %v61 = vld [vmem:[%s2 + $0x68] sm:$0xff]
    %v62 = vld [vmem:[%s2 + $0x70] sm:$0xff]
    %v63 = vld [vmem:[%s2 + $0x78] sm:$0xff]
    %v64 = vld [vmem:[%s2 + $0x80] sm:$0xff]
    %v65 = vld [vmem:[%s2 + $0x88] sm:$0xff]
    %v66 = vld [vmem:[%s2 + $0x90] sm:$0xff]
    %v67 = vld [vmem:[%s2 + $0x98] sm:$0xff]
    %v68 = vld [vmem:[%s2 + $0xa0] sm:$0xff]
    %v69 = vld [vmem:[%s2 + $0xa8] sm:$0xff]
    %v70 = vld [vmem:[%s2 + $0xb0] sm:$0xff]
    %v71 = vld [vmem:[%s2 + $0xb8] sm:$0xff]
    %v72 = vld [vmem:[%s2 + $0xc0] sm:$0xff]
    %v73 = vld [vmem:[%s2 + $0xc8] sm:$0xff]
    %v74 = vld [vmem:[%s2 + $0xd0] sm:$0xff]
    %v75 = vld [vmem:[%s2 + $0xd8] sm:$0xff]
    %v76 = vld [vmem:[%s2 + $0xe0] sm:$0xff]
    %v77 = vld [vmem:[%s2 + $0xe8] sm:$0xff]
    %v78 = vld [vmem:[%s2 + $0xf0] sm:$0xff]
    %v79 = vld [vmem:[%s2 + $0xf8] sm:$0xff]
    %v80 = vld [vmem:[%s2 + $0x100] sm:$0xff]
    %v81 = vld [vmem:[%s2 + $0x108] sm:$0xff]
    %v82 = vld [vmem:[%s2 + $0x110] sm:$0xff]
    %v83 = vld [vmem:[%s2 + $0x118] sm:$0xff]
    %v84 = vld [vmem:[%s2 + $0x120] sm:$0xff]
    %v85 = vld [vmem:[%s2 + $0x128] sm:$0xff]
    %v86 = vld [vmem:[%s2 + $0x130] sm:$0xff]
    %v87 = vld [vmem:[%s2 + $0x138] sm:$0xff]
    %v88 = vld [vmem:[%s2 + $0x140] sm:$0xff]
    %v89 = vld [vmem:[%s2 + $0x148] sm:$0xff]
    %v90 = vld [vmem:[%s2 + $0x150] sm:$0xff]
    %v91 = vld [vmem:[%s2 + $0x158] sm:$0xff]
    %v92 = vld [vmem:[%s2 + $0x160] sm:$0xff]
    %v93 = vld [vmem:[%s2 + $0x168] sm:$0xff]
    %v94 = vld [vmem:[%s2 + $0x170] sm:$0xff]
    %v95 = vld [vmem:[%s2 + $0x178] sm:$0xff]
    %vm96 = vcmask 261120
    %v98 = vsel %vm96, %v46, 0
    %v101 = vsel %vm96, %v47, 0
    %103 = vmatprep.subr.mxu0 0.0
    %104 = vmatpush1.msra.mxu0 %v48
    %105 = vmatprep.subr.mxu0 0.0
    %106 = vmatpush1.msra.mxu0 %v49
    %107 = vmatprep.subr.mxu0 0.0
    %108 = vmatpush1.msra.mxu0 %v50
    %109 = vmatprep.subr.mxu0 0.0
    %110 = vmatpush1.msra.mxu0 %v51
    %111 = vmatprep.subr.mxu0 0.0
    %112 = vmatpush1.msra.mxu0 0.0
    %113 = vmatprep.subr.mxu0 0.0
    %114 = vmatpush1.msra.mxu0 0.0
    %115 = vmatprep.subr.mxu0 0.0
    %116 = vmatpush1.msra.mxu0 0.0
    %117 = vmatprep.subr.mxu0 0.0
    %118 = vmatpush1.msra.mxu0 0.0
    %119 = vmatprep.subr.mxu0 0.0
    %120 = vmatpush1.msra.mxu0 0.0
    %121 = vmatprep.subr.mxu0 0.0
    %122 = vmatpush1.msra.mxu0 0.0
    %123 = vmatprep.subr.mxu0 0.0
    %124 = vmatpush1.msra.mxu0 0.0
    %125 = vmatprep.subr.mxu0 0.0
    %126 = vmatpush1.msra.mxu0 0.0
    %127 = vmatprep.subr.mxu0 0.0
    %128 = vmatpush1.msra.mxu0 0.0
    %129 = vmatprep.subr.mxu0 0.0
    %130 = vmatpush1.msra.mxu0 0.0
    %131 = vmatprep.subr.mxu0 0.0
    %132 = vmatpush1.msra.mxu0 0.0
    %133 = vmatprep.subr.mxu0 0.0
    %134 = vmatpush1.msra.mxu0 0.0
    %135 = vmatprep.subr.mxu0 0.0
    %136 = vmatpush1.msra.mxu0 0.0
    %137 = vmatprep.subr.mxu0 0.0
    %138 = vmatpush1.msra.mxu0 0.0
    %139 = vmatprep.subr.mxu0 0.0
    %140 = vmatpush1.msra.mxu0 0.0
    %141 = vmatprep.subr.mxu0 0.0
    %142 = vmatpush1.msra.mxu0 0.0
    %143 = vmatprep.subr.mxu0 0.0
    %144 = vmatpush1.msra.mxu0 0.0
    %145 = vmatprep.subr.mxu0 0.0
    %146 = vmatpush1.msra.mxu0 0.0
    %147 = vmatprep.subr.mxu0 0.0
    %148 = vmatpush1.msra.mxu0 0.0
    %149 = vmatprep.subr.mxu0 0.0
    %150 = vmatpush1.msra.mxu0 0.0
    %151 = vmatprep.subr.mxu0 0.0
    %152 = vmatpush1.msra.mxu0 0.0
    %153 = vmatprep.subr.mxu0 0.0
    %154 = vmatpush1.msra.mxu0 0.0
    %155 = vmatprep.subr.mxu0 0.0
    %156 = vmatpush1.msra.mxu0 0.0
    %157 = vmatprep.subr.mxu0 0.0
    %158 = vmatpush1.msra.mxu0 0.0
    %159 = vmatprep.subr.mxu0 0.0
    %160 = vmatpush1.msra.mxu0 0.0
    %161 = vmatprep.subr.mxu0 0.0
    %162 = vmatpush1.msra.mxu0 0.0
    %163 = vmatprep.subr.mxu0 0.0
    %164 = vmatpush1.msra.mxu0 0.0
    %165 = vmatprep.subr.mxu0 0.0
    %166 = vmatpush1.msra.mxu0 0.0
    %167 = vmatprep.mubr.f32.mxu0 0.0
    %168 = vmatmul.mubr.f32.gmra.mrb[0].mxu0 %v98
    %v169 = vpop.f32.mrb[0].mxu0
    %v170 = vadd.f32 0.0, %v169
    %v171 = vpop.f32.mrb[0].mxu0
    %172 = vmatprep.mubr.f32.mxu0 0.0
    %173 = vmatmul.mubr.f32.gmra.mrb[0].mxu0 %v101
    %v174 = vpop.f32.mrb[0].mxu0
    %v175 = vadd.f32 0.0, %v174
    %v176 = vpop.f32.mrb[0].mxu0
    %177 = vdwg.mxu0
    %178 = vmatprep.subr.mxu0 0.0
    %179 = vmatpush1.msra.mxu0 %v52
    %180 = vmatprep.subr.mxu0 0.0
    %181 = vmatpush1.msra.mxu0 %v53
    %182 = vmatprep.subr.mxu0 0.0
    %183 = vmatpush1.msra.mxu0 %v54
    %184 = vmatprep.subr.mxu0 0.0
    %185 = vmatpush1.msra.mxu0 %v55
    %186 = vmatprep.subr.mxu0 0.0
    %187 = vmatpush1.msra.mxu0 0.0
    %188 = vmatprep.subr.mxu0 0.0
    %189 = vmatpush1.msra.mxu0 0.0
    %190 = vmatprep.subr.mxu0 0.0
    %191 = vmatpush1.msra.mxu0 0.0
    %192 = vmatprep.subr.mxu0 0.0
    %193 = vmatpush1.msra.mxu0 0.0
    %194 = vmatprep.subr.mxu0 0.0
    %195 = vmatpush1.msra.mxu0 0.0
    %196 = vmatprep.subr.mxu0 0.0
    %197 = vmatpush1.msra.mxu0 0.0
    %198 = vmatprep.subr.mxu0 0.0
    %199 = vmatpush1.msra.mxu0 0.0
    %200 = vmatprep.subr.mxu0 0.0
    %201 = vmatpush1.msra.mxu0 0.0
    %202 = vmatprep.subr.mxu0 0.0
    %203 = vmatpush1.msra.mxu0 0.0
    %204 = vmatprep.subr.mxu0 0.0
    %205 = vmatpush1.msra.mxu0 0.0
    %206 = vmatprep.subr.mxu0 0.0
    %207 = vmatpush1.msra.mxu0 0.0
    %208 = vmatprep.subr.mxu0 0.0
    %209 = vmatpush1.msra.mxu0 0.0
    %210 = vmatprep.subr.mxu0 0.0
    %211 = vmatpush1.msra.mxu0 0.0
    %212 = vmatprep.subr.mxu0 0.0
    %213 = vmatpush1.msra.mxu0 0.0
    %214 = vmatprep.subr.mxu0 0.0
    %215 = vmatpush1.msra.mxu0 0.0
    %216 = vmatprep.subr.mxu0 0.0
    %217 = vmatpush1.msra.mxu0 0.0
    %218 = vmatprep.subr.mxu0 0.0
    %219 = vmatpush1.msra.mxu0 0.0
    %220 = vmatprep.subr.mxu0 0.0
    %221 = vmatpush1.msra.mxu0 0.0
    %222 = vmatprep.subr.mxu0 0.0
    %223 = vmatpush1.msra.mxu0 0.0
    %224 = vmatprep.subr.mxu0 0.0
    %225 = vmatpush1.msra.mxu0 0.0
    %226 = vmatprep.subr.mxu0 0.0
    %227 = vmatpush1.msra.mxu0 0.0
    %228 = vmatprep.subr.mxu0 0.0
    %229 = vmatpush1.msra.mxu0 0.0
    %230 = vmatprep.subr.mxu0 0.0
    %231 = vmatpush1.msra.mxu0 0.0
    %232 = vmatprep.subr.mxu0 0.0
    %233 = vmatpush1.msra.mxu0 0.0
    %234 = vmatprep.subr.mxu0 0.0
    %235 = vmatpush1.msra.mxu0 0.0
    %236 = vmatprep.subr.mxu0 0.0
    %237 = vmatpush1.msra.mxu0 0.0
    %238 = vmatprep.subr.mxu0 0.0
    %239 = vmatpush1.msra.mxu0 0.0
    %240 = vmatprep.subr.mxu0 0.0
    %241 = vmatpush1.msra.mxu0 0.0
    %242 = vmatprep.mubr.f32.mxu0 0.0
    %243 = vmatmul.mubr.f32.gmra.mrb[0].mxu0 %v98
    %v244 = vpop.f32.mrb[0].mxu0
    %v245 = vadd.f32 0.0, %v244
    %v246 = vpop.f32.mrb[0].mxu0
    %247 = vmatprep.mubr.f32.mxu0 0.0
    %248 = vmatmul.mubr.f32.gmra.mrb[0].mxu0 %v101
    %v249 = vpop.f32.mrb[0].mxu0
    %v250 = vadd.f32 0.0, %v249
    %v251 = vpop.f32.mrb[0].mxu0
    %252 = vdwg.mxu0
    %253 = vmatprep.subr.mxu0 0.0
    %254 = vmatpush1.msra.mxu0 %v56
    %255 = vmatprep.subr.mxu0 0.0
    %256 = vmatpush1.msra.mxu0 %v57
    %257 = vmatprep.subr.mxu0 0.0
    %258 = vmatpush1.msra.mxu0 %v58
    %259 = vmatprep.subr.mxu0 0.0
    %260 = vmatpush1.msra.mxu0 %v59
    %261 = vmatprep.subr.mxu0 0.0
    %262 = vmatpush1.msra.mxu0 0.0
    %263 = vmatprep.subr.mxu0 0.0
    %264 = vmatpush1.msra.mxu0 0.0
    %265 = vmatprep.subr.mxu0 0.0
    %266 = vmatpush1.msra.mxu0 0.0
    %267 = vmatprep.subr.mxu0 0.0
    %268 = vmatpush1.msra.mxu0 0.0
    %269 = vmatprep.subr.mxu0 0.0
    %270 = vmatpush1.msra.mxu0 0.0
    %271 = vmatprep.subr.mxu0 0.0
    %272 = vmatpush1.msra.mxu0 0.0
    %273 = vmatprep.subr.mxu0 0.0
    %274 = vmatpush1.msra.mxu0 0.0
    %275 = vmatprep.subr.mxu0 0.0
    %276 = vmatpush1.msra.mxu0 0.0
    %277 = vmatprep.subr.mxu0 0.0
    %278 = vmatpush1.msra.mxu0 0.0
    %279 = vmatprep.subr.mxu0 0.0
    %280 = vmatpush1.msra.mxu0 0.0
    %281 = vmatprep.subr.mxu0 0.0
    %282 = vmatpush1.msra.mxu0 0.0
    %283 = vmatprep.subr.mxu0 0.0
    %284 = vmatpush1.msra.mxu0 0.0
    %285 = vmatprep.subr.mxu0 0.0
    %286 = vmatpush1.msra.mxu0 0.0
    %287 = vmatprep.subr.mxu0 0.0
    %288 = vmatpush1.msra.mxu0 0.0
    %289 = vmatprep.subr.mxu0 0.0
    %290 = vmatpush1.msra.mxu0 0.0
    %291 = vmatprep.subr.mxu0 0.0
    %292 = vmatpush1.msra.mxu0 0.0
    %293 = vmatprep.subr.mxu0 0.0
    %294 = vmatpush1.msra.mxu0 0.0
    %295 = vmatprep.subr.mxu0 0.0
    %296 = vmatpush1.msra.mxu0 0.0
    %297 = vmatprep.subr.mxu0 0.0
    %298 = vmatpush1.msra.mxu0 0.0
    %299 = vmatprep.subr.mxu0 0.0
    %300 = vmatpush1.msra.mxu0 0.0
    %301 = vmatprep.subr.mxu0 0.0
    %302 = vmatpush1.msra.mxu0 0.0
    %303 = vmatprep.subr.mxu0 0.0
    %304 = vmatpush1.msra.mxu0 0.0
    %305 = vmatprep.subr.mxu0 0.0
    %306 = vmatpush1.msra.mxu0 0.0
    %307 = vmatprep.subr.mxu0 0.0
    %308 = vmatpush1.msra.mxu0 0.0
    %309 = vmatprep.subr.mxu0 0.0
    %310 = vmatpush1.msra.mxu0 0.0
    %311 = vmatprep.subr.mxu0 0.0
    %312 = vmatpush1.msra.mxu0 0.0
    %313 = vmatprep.subr.mxu0 0.0
    %314 = vmatpush1.msra.mxu0 0.0
    %315 = vmatprep.subr.mxu0 0.0
    %316 = vmatpush1.msra.mxu0 0.0
    %317 = vmatprep.mubr.f32.mxu0 0.0
    %318 = vmatmul.mubr.f32.gmra.mrb[0].mxu0 %v98
    %v319 = vpop.f32.mrb[0].mxu0
    %v320 = vadd.f32 0.0, %v319
    %v321 = vpop.f32.mrb[0].mxu0
    %322 = vmatprep.mubr.f32.mxu0 0.0
    %323 = vmatmul.mubr.f32.gmra.mrb[0].mxu0 %v101
    %v324 = vpop.f32.mrb[0].mxu0
    %v325 = vadd.f32 0.0, %v324
    %v326 = vpop.f32.mrb[0].mxu0
    %327 = vdwg.mxu0
    %328 = vmatprep.subr.mxu0 0.0
    %329 = vmatpush1.msra.mxu0 %v60
    %330 = vmatprep.subr.mxu0 0.0
    %331 = vmatpush1.msra.mxu0 %v61
    %332 = vmatprep.subr.mxu0 0.0
    %333 = vmatpush1.msra.mxu0 %v62
    %334 = vmatprep.subr.mxu0 0.0
    %335 = vmatpush1.msra.mxu0 %v63
    %336 = vmatprep.subr.mxu0 0.0
    %337 = vmatpush1.msra.mxu0 0.0
    %338 = vmatprep.subr.mxu0 0.0
    %339 = vmatpush1.msra.mxu0 0.0
    %340 = vmatprep.subr.mxu0 0.0
    %341 = vmatpush1.msra.mxu0 0.0
    %342 = vmatprep.subr.mxu0 0.0
    %343 = vmatpush1.msra.mxu0 0.0
    %344 = vmatprep.subr.mxu0 0.0
    %345 = vmatpush1.msra.mxu0 0.0
    %346 = vmatprep.subr.mxu0 0.0
    %347 = vmatpush1.msra.mxu0 0.0
    %348 = vmatprep.subr.mxu0 0.0
    %349 = vmatpush1.msra.mxu0 0.0
    %350 = vmatprep.subr.mxu0 0.0
    %351 = vmatpush1.msra.mxu0 0.0
    %352 = vmatprep.subr.mxu0 0.0
    %353 = vmatpush1.msra.mxu0 0.0
    %354 = vmatprep.subr.mxu0 0.0
    %355 = vmatpush1.msra.mxu0 0.0
    %356 = vmatprep.subr.mxu0 0.0
    %357 = vmatpush1.msra.mxu0 0.0
    %358 = vmatprep.subr.mxu0 0.0
    %359 = vmatpush1.msra.mxu0 0.0
    %360 = vmatprep.subr.mxu0 0.0
    %361 = vmatpush1.msra.mxu0 0.0
    %362 = vmatprep.subr.mxu0 0.0
    %363 = vmatpush1.msra.mxu0 0.0
    %364 = vmatprep.subr.mxu0 0.0
    %365 = vmatpush1.msra.mxu0 0.0
    %366 = vmatprep.subr.mxu0 0.0
    %367 = vmatpush1.msra.mxu0 0.0
    %368 = vmatprep.subr.mxu0 0.0
    %369 = vmatpush1.msra.mxu0 0.0
    %370 = vmatprep.subr.mxu0 0.0
    %371 = vmatpush1.msra.mxu0 0.0
    %372 = vmatprep.subr.mxu0 0.0
    %373 = vmatpush1.msra.mxu0 0.0
    %374 = vmatprep.subr.mxu0 0.0
    %375 = vmatpush1.msra.mxu0 0.0
    %376 = vmatprep.subr.mxu0 0.0
    %377 = vmatpush1.msra.mxu0 0.0
    %378 = vmatprep.subr.mxu0 0.0
    %379 = vmatpush1.msra.mxu0 0.0
    %380 = vmatprep.subr.mxu0 0.0
    %381 = vmatpush1.msra.mxu0 0.0
    %382 = vmatprep.subr.mxu0 0.0
    %383 = vmatpush1.msra.mxu0 0.0
    %384 = vmatprep.subr.mxu0 0.0
    %385 = vmatpush1.msra.mxu0 0.0
    %386 = vmatprep.subr.mxu0 0.0
    %387 = vmatpush1.msra.mxu0 0.0
    %388 = vmatprep.subr.mxu0 0.0
    %389 = vmatpush1.msra.mxu0 0.0
    %390 = vmatprep.subr.mxu0 0.0
    %391 = vmatpush1.msra.mxu0 0.0
    %392 = vmatprep.mubr.f32.mxu0 0.0
    %393 = vmatmul.mubr.f32.gmra.mrb[0].mxu0 %v98
    %v394 = vpop.f32.mrb[0].mxu0
    %v395 = vadd.f32 0.0, %v394
    %v396 = vpop.f32.mrb[0].mxu0
    %397 = vmatprep.mubr.f32.mxu0 0.0
    %398 = vmatmul.mubr.f32.gmra.mrb[0].mxu0 %v101
    %v399 = vpop.f32.mrb[0].mxu0
    %v400 = vadd.f32 0.0, %v399
    %v401 = vpop.f32.mrb[0].mxu0
    %402 = vdwg.mxu0
    %403 = vmatprep.subr.mxu0 0.0
    %404 = vmatpush1.msra.mxu0 %v64
    %405 = vmatprep.subr.mxu0 0.0
    %406 = vmatpush1.msra.mxu0 %v65
    %407 = vmatprep.subr.mxu0 0.0
    %408 = vmatpush1.msra.mxu0 %v66
    %409 = vmatprep.subr.mxu0 0.0
    %410 = vmatpush1.msra.mxu0 %v67
    %411 = vmatprep.subr.mxu0 0.0
    %412 = vmatpush1.msra.mxu0 0.0
    %413 = vmatprep.subr.mxu0 0.0
    %414 = vmatpush1.msra.mxu0 0.0
    %415 = vmatprep.subr.mxu0 0.0
    %416 = vmatpush1.msra.mxu0 0.0
    %417 = vmatprep.subr.mxu0 0.0
    %418 = vmatpush1.msra.mxu0 0.0
    %419 = vmatprep.subr.mxu0 0.0
    %420 = vmatpush1.msra.mxu0 0.0
    %421 = vmatprep.subr.mxu0 0.0
    %422 = vmatpush1.msra.mxu0 0.0
    %423 = vmatprep.subr.mxu0 0.0
    %424 = vmatpush1.msra.mxu0 0.0
    %425 = vmatprep.subr.mxu0 0.0
    %426 = vmatpush1.msra.mxu0 0.0
    %427 = vmatprep.subr.mxu0 0.0
    %428 = vmatpush1.msra.mxu0 0.0
    %429 = vmatprep.subr.mxu0 0.0
    %430 = vmatpush1.msra.mxu0 0.0
    %431 = vmatprep.subr.mxu0 0.0
    %432 = vmatpush1.msra.mxu0 0.0
    %433 = vmatprep.subr.mxu0 0.0
    %434 = vmatpush1.msra.mxu0 0.0
    %435 = vmatprep.subr.mxu0 0.0
    %436 = vmatpush1.msra.mxu0 0.0
    %437 = vmatprep.subr.mxu0 0.0
    %438 = vmatpush1.msra.mxu0 0.0
    %439 = vmatprep.subr.mxu0 0.0
    %440 = vmatpush1.msra.mxu0 0.0
    %441 = vmatprep.subr.mxu0 0.0
    %442 = vmatpush1.msra.mxu0 0.0
    %443 = vmatprep.subr.mxu0 0.0
    %444 = vmatpush1.msra.mxu0 0.0
    %445 = vmatprep.subr.mxu0 0.0
    %446 = vmatpush1.msra.mxu0 0.0
    %447 = vmatprep.subr.mxu0 0.0
    %448 = vmatpush1.msra.mxu0 0.0
    %449 = vmatprep.subr.mxu0 0.0
    %450 = vmatpush1.msra.mxu0 0.0
    %451 = vmatprep.subr.mxu0 0.0
    %452 = vmatpush1.msra.mxu0 0.0
    %453 = vmatprep.subr.mxu0 0.0
    %454 = vmatpush1.msra.mxu0 0.0
    %455 = vmatprep.subr.mxu0 0.0
    %456 = vmatpush1.msra.mxu0 0.0
    %457 = vmatprep.subr.mxu0 0.0
    %458 = vmatpush1.msra.mxu0 0.0
    %459 = vmatprep.subr.mxu0 0.0
    %460 = vmatpush1.msra.mxu0 0.0
    %461 = vmatprep.subr.mxu0 0.0
    %462 = vmatpush1.msra.mxu0 0.0
    %463 = vmatprep.subr.mxu0 0.0
    %464 = vmatpush1.msra.mxu0 0.0
    %465 = vmatprep.subr.mxu0 0.0
    %466 = vmatpush1.msra.mxu0 0.0
    %467 = vmatprep.mubr.f32.mxu0 0.0
    %468 = vmatmul.mubr.f32.gmra.mrb[0].mxu0 %v98
    %v469 = vpop.f32.mrb[0].mxu0
    %v470 = vadd.f32 0.0, %v469
    %v471 = vpop.f32.mrb[0].mxu0
    %472 = vmatprep.mubr.f32.mxu0 0.0
    %473 = vmatmul.mubr.f32.gmra.mrb[0].mxu0 %v101
    %v474 = vpop.f32.mrb[0].mxu0
    %v475 = vadd.f32 0.0, %v474
    %v476 = vpop.f32.mrb[0].mxu0
    %477 = vdwg.mxu0
    %478 = vmatprep.subr.mxu0 0.0
    %479 = vmatpush1.msra.mxu0 %v68
    %480 = vmatprep.subr.mxu0 0.0
    %481 = vmatpush1.msra.mxu0 %v69
    %482 = vmatprep.subr.mxu0 0.0
    %483 = vmatpush1.msra.mxu0 %v70
    %484 = vmatprep.subr.mxu0 0.0
    %485 = vmatpush1.msra.mxu0 %v71
    %486 = vmatprep.subr.mxu0 0.0
    %487 = vmatpush1.msra.mxu0 0.0
    %488 = vmatprep.subr.mxu0 0.0
    %489 = vmatpush1.msra.mxu0 0.0
    %490 = vmatprep.subr.mxu0 0.0
    %491 = vmatpush1.msra.mxu0 0.0
    %492 = vmatprep.subr.mxu0 0.0
    %493 = vmatpush1.msra.mxu0 0.0
    %494 = vmatprep.subr.mxu0 0.0
    %495 = vmatpush1.msra.mxu0 0.0
    %496 = vmatprep.subr.mxu0 0.0
    %497 = vmatpush1.msra.mxu0 0.0
    %498 = vmatprep.subr.mxu0 0.0
    %499 = vmatpush1.msra.mxu0 0.0
    %500 = vmatprep.subr.mxu0 0.0
    %501 = vmatpush1.msra.mxu0 0.0
    %502 = vmatprep.subr.mxu0 0.0
    %503 = vmatpush1.msra.mxu0 0.0
    %504 = vmatprep.subr.mxu0 0.0
    %505 = vmatpush1.msra.mxu0 0.0
    %506 = vmatprep.subr.mxu0 0.0
    %507 = vmatpush1.msra.mxu0 0.0
    %508 = vmatprep.subr.mxu0 0.0
    %509 = vmatpush1.msra.mxu0 0.0
    %510 = vmatprep.subr.mxu0 0.0
    %511 = vmatpush1.msra.mxu0 0.0
    %512 = vmatprep.subr.mxu0 0.0
    %513 = vmatpush1.msra.mxu0 0.0
    %514 = vmatprep.subr.mxu0 0.0
    %515 = vmatpush1.msra.mxu0 0.0
    %516 = vmatprep.subr.mxu0 0.0
    %517 = vmatpush1.msra.mxu0 0.0
    %518 = vmatprep.subr.mxu0 0.0
    %519 = vmatpush1.msra.mxu0 0.0
    %520 = vmatprep.subr.mxu0 0.0
    %521 = vmatpush1.msra.mxu0 0.0
    %522 = vmatprep.subr.mxu0 0.0
    %523 = vmatpush1.msra.mxu0 0.0
    %524 = vmatprep.subr.mxu0 0.0
    %525 = vmatpush1.msra.mxu0 0.0
    %526 = vmatprep.subr.mxu0 0.0
    %527 = vmatpush1.msra.mxu0 0.0
    %528 = vmatprep.subr.mxu0 0.0
    %529 = vmatpush1.msra.mxu0 0.0
    %530 = vmatprep.subr.mxu0 0.0
    %531 = vmatpush1.msra.mxu0 0.0
    %532 = vmatprep.subr.mxu0 0.0
    %533 = vmatpush1.msra.mxu0 0.0
    %534 = vmatprep.subr.mxu0 0.0
    %535 = vmatpush1.msra.mxu0 0.0
    %536 = vmatprep.subr.mxu0 0.0
    %537 = vmatpush1.msra.mxu0 0.0
    %538 = vmatprep.subr.mxu0 0.0
    %539 = vmatpush1.msra.mxu0 0.0
    %540 = vmatprep.subr.mxu0 0.0
    %541 = vmatpush1.msra.mxu0 0.0
    %542 = vmatprep.mubr.f32.mxu0 0.0
    %543 = vmatmul.mubr.f32.gmra.mrb[0].mxu0 %v98
    %v544 = vpop.f32.mrb[0].mxu0
    %v545 = vadd.f32 0.0, %v544
    %v546 = vpop.f32.mrb[0].mxu0
    %547 = vmatprep.mubr.f32.mxu0 0.0
    %548 = vmatmul.mubr.f32.gmra.mrb[0].mxu0 %v101
    %v549 = vpop.f32.mrb[0].mxu0
    %v550 = vadd.f32 0.0, %v549
    %v551 = vpop.f32.mrb[0].mxu0
    %552 = vdwg.mxu0
    %553 = vmatprep.subr.mxu0 0.0
    %554 = vmatpush1.msra.mxu0 %v72
    %555 = vmatprep.subr.mxu0 0.0
    %556 = vmatpush1.msra.mxu0 %v73
    %557 = vmatprep.subr.mxu0 0.0
    %558 = vmatpush1.msra.mxu0 %v74
    %559 = vmatprep.subr.mxu0 0.0
    %560 = vmatpush1.msra.mxu0 %v75
    %561 = vmatprep.subr.mxu0 0.0
    %562 = vmatpush1.msra.mxu0 0.0
    %563 = vmatprep.subr.mxu0 0.0
    %564 = vmatpush1.msra.mxu0 0.0
    %565 = vmatprep.subr.mxu0 0.0
    %566 = vmatpush1.msra.mxu0 0.0
    %567 = vmatprep.subr.mxu0 0.0
    %568 = vmatpush1.msra.mxu0 0.0
    %569 = vmatprep.subr.mxu0 0.0
    %570 = vmatpush1.msra.mxu0 0.0
    %571 = vmatprep.subr.mxu0 0.0
    %572 = vmatpush1.msra.mxu0 0.0
    %573 = vmatprep.subr.mxu0 0.0
    %574 = vmatpush1.msra.mxu0 0.0
    %575 = vmatprep.subr.mxu0 0.0
    %576 = vmatpush1.msra.mxu0 0.0
    %577 = vmatprep.subr.mxu0 0.0
    %578 = vmatpush1.msra.mxu0 0.0
    %579 = vmatprep.subr.mxu0 0.0
    %580 = vmatpush1.msra.mxu0 0.0
    %581 = vmatprep.subr.mxu0 0.0
    %582 = vmatpush1.msra.mxu0 0.0
    %583 = vmatprep.subr.mxu0 0.0
    %584 = vmatpush1.msra.mxu0 0.0
    %585 = vmatprep.subr.mxu0 0.0
    %586 = vmatpush1.msra.mxu0 0.0
    %587 = vmatprep.subr.mxu0 0.0
    %588 = vmatpush1.msra.mxu0 0.0
    %589 = vmatprep.subr.mxu0 0.0
    %590 = vmatpush1.msra.mxu0 0.0
    %591 = vmatprep.subr.mxu0 0.0
    %592 = vmatpush1.msra.mxu0 0.0
    %593 = vmatprep.subr.mxu0 0.0
    %594 = vmatpush1.msra.mxu0 0.0
    %595 = vmatprep.subr.mxu0 0.0
    %596 = vmatpush1.msra.mxu0 0.0
    %597 = vmatprep.subr.mxu0 0.0
    %598 = vmatpush1.msra.mxu0 0.0
    %599 = vmatprep.subr.mxu0 0.0
    %600 = vmatpush1.msra.mxu0 0.0
    %601 = vmatprep.subr.mxu0 0.0
    %602 = vmatpush1.msra.mxu0 0.0
    %603 = vmatprep.subr.mxu0 0.0
    %604 = vmatpush1.msra.mxu0 0.0
    %605 = vmatprep.subr.mxu0 0.0
    %606 = vmatpush1.msra.mxu0 0.0
    %607 = vmatprep.subr.mxu0 0.0
    %608 = vmatpush1.msra.mxu0 0.0
    %609 = vmatprep.subr.mxu0 0.0
    %610 = vmatpush1.msra.mxu0 0.0
    %611 = vmatprep.subr.mxu0 0.0
    %612 = vmatpush1.msra.mxu0 0.0
    %613 = vmatprep.subr.mxu0 0.0
    %614 = vmatpush1.msra.mxu0 0.0
    %615 = vmatprep.subr.mxu0 0.0
    %616 = vmatpush1.msra.mxu0 0.0
    %617 = vmatprep.mubr.f32.mxu0 0.0
    %618 = vmatmul.mubr.f32.gmra.mrb[0].mxu0 %v98
    %v619 = vpop.f32.mrb[0].mxu0
    %v620 = vadd.f32 0.0, %v619
    %v621 = vpop.f32.mrb[0].mxu0
    %622 = vmatprep.mubr.f32.mxu0 0.0
    %623 = vmatmul.mubr.f32.gmra.mrb[0].mxu0 %v101
    %v624 = vpop.f32.mrb[0].mxu0
    %v625 = vadd.f32 0.0, %v624
    %v626 = vpop.f32.mrb[0].mxu0
    %627 = vdwg.mxu0
    %628 = vmatprep.subr.mxu0 0.0
    %629 = vmatpush1.msra.mxu0 %v76
    %630 = vmatprep.subr.mxu0 0.0
    %631 = vmatpush1.msra.mxu0 %v77
    %632 = vmatprep.subr.mxu0 0.0
    %633 = vmatpush1.msra.mxu0 %v78
    %634 = vmatprep.subr.mxu0 0.0
    %635 = vmatpush1.msra.mxu0 %v79
    %636 = vmatprep.subr.mxu0 0.0
    %637 = vmatpush1.msra.mxu0 0.0
    %638 = vmatprep.subr.mxu0 0.0
    %639 = vmatpush1.msra.mxu0 0.0
    %640 = vmatprep.subr.mxu0 0.0
    %641 = vmatpush1.msra.mxu0 0.0
    %642 = vmatprep.subr.mxu0 0.0
    %643 = vmatpush1.msra.mxu0 0.0
    %644 = vmatprep.subr.mxu0 0.0
    %645 = vmatpush1.msra.mxu0 0.0
    %646 = vmatprep.subr.mxu0 0.0
    %647 = vmatpush1.msra.mxu0 0.0
    %648 = vmatprep.subr.mxu0 0.0
    %649 = vmatpush1.msra.mxu0 0.0
    %650 = vmatprep.subr.mxu0 0.0
    %651 = vmatpush1.msra.mxu0 0.0
    %652 = vmatprep.subr.mxu0 0.0
    %653 = vmatpush1.msra.mxu0 0.0
    %654 = vmatprep.subr.mxu0 0.0
    %655 = vmatpush1.msra.mxu0 0.0
    %656 = vmatprep.subr.mxu0 0.0
    %657 = vmatpush1.msra.mxu0 0.0
    %658 = vmatprep.subr.mxu0 0.0
    %659 = vmatpush1.msra.mxu0 0.0
    %660 = vmatprep.subr.mxu0 0.0
    %661 = vmatpush1.msra.mxu0 0.0
    %662 = vmatprep.subr.mxu0 0.0
    %663 = vmatpush1.msra.mxu0 0.0
    %664 = vmatprep.subr.mxu0 0.0
    %665 = vmatpush1.msra.mxu0 0.0
    %666 = vmatprep.subr.mxu0 0.0
    %667 = vmatpush1.msra.mxu0 0.0
    %668 = vmatprep.subr.mxu0 0.0
    %669 = vmatpush1.msra.mxu0 0.0
    %670 = vmatprep.subr.mxu0 0.0
    %671 = vmatpush1.msra.mxu0 0.0
    %672 = vmatprep.subr.mxu0 0.0
    %673 = vmatpush1.msra.mxu0 0.0
    %674 = vmatprep.subr.mxu0 0.0
    %675 = vmatpush1.msra.mxu0 0.0
    %676 = vmatprep.subr.mxu0 0.0
    %677 = vmatpush1.msra.mxu0 0.0
    %678 = vmatprep.subr.mxu0 0.0
    %679 = vmatpush1.msra.mxu0 0.0
    %680 = vmatprep.subr.mxu0 0.0
    %681 = vmatpush1.msra.mxu0 0.0
    %682 = vmatprep.subr.mxu0 0.0
    %683 = vmatpush1.msra.mxu0 0.0
    %684 = vmatprep.subr.mxu0 0.0
    %685 = vmatpush1.msra.mxu0 0.0
    %686 = vmatprep.subr.mxu0 0.0
    %687 = vmatpush1.msra.mxu0 0.0
    %688 = vmatprep.subr.mxu0 0.0
    %689 = vmatpush1.msra.mxu0 0.0
    %690 = vmatprep.subr.mxu0 0.0
    %691 = vmatpush1.msra.mxu0 0.0
    %692 = vmatprep.mubr.f32.mxu0 0.0
    %693 = vmatmul.mubr.f32.gmra.mrb[0].mxu0 %v98
    %v694 = vpop.f32.mrb[0].mxu0
    %v695 = vadd.f32 0.0, %v694
    %v696 = vpop.f32.mrb[0].mxu0
    %697 = vmatprep.mubr.f32.mxu0 0.0
    %698 = vmatmul.mubr.f32.gmra.mrb[0].mxu0 %v101
    %v699 = vpop.f32.mrb[0].mxu0
    %v700 = vadd.f32 0.0, %v699
    %v701 = vpop.f32.mrb[0].mxu0
    %702 = vdwg.mxu0
    %703 = vmatprep.subr.mxu0 0.0
    %704 = vmatpush1.msra.mxu0 %v80
    %705 = vmatprep.subr.mxu0 0.0
    %706 = vmatpush1.msra.mxu0 %v81
    %707 = vmatprep.subr.mxu0 0.0
    %708 = vmatpush1.msra.mxu0 %v82
    %709 = vmatprep.subr.mxu0 0.0
    %710 = vmatpush1.msra.mxu0 %v83
    %711 = vmatprep.subr.mxu0 0.0
    %712 = vmatpush1.msra.mxu0 0.0
    %713 = vmatprep.subr.mxu0 0.0
    %714 = vmatpush1.msra.mxu0 0.0
    %715 = vmatprep.subr.mxu0 0.0
    %716 = vmatpush1.msra.mxu0 0.0
    %717 = vmatprep.subr.mxu0 0.0
    %718 = vmatpush1.msra.mxu0 0.0
    %719 = vmatprep.subr.mxu0 0.0
    %720 = vmatpush1.msra.mxu0 0.0
    %721 = vmatprep.subr.mxu0 0.0
    %722 = vmatpush1.msra.mxu0 0.0
    %723 = vmatprep.subr.mxu0 0.0
    %724 = vmatpush1.msra.mxu0 0.0
    %725 = vmatprep.subr.mxu0 0.0
    %726 = vmatpush1.msra.mxu0 0.0
    %727 = vmatprep.subr.mxu0 0.0
    %728 = vmatpush1.msra.mxu0 0.0
    %729 = vmatprep.subr.mxu0 0.0
    %730 = vmatpush1.msra.mxu0 0.0
    %731 = vmatprep.subr.mxu0 0.0
    %732 = vmatpush1.msra.mxu0 0.0
    %733 = vmatprep.subr.mxu0 0.0
    %734 = vmatpush1.msra.mxu0 0.0
    %735 = vmatprep.subr.mxu0 0.0
    %736 = vmatpush1.msra.mxu0 0.0
    %737 = vmatprep.subr.mxu0 0.0
    %738 = vmatpush1.msra.mxu0 0.0
    %739 = vmatprep.subr.mxu0 0.0
    %740 = vmatpush1.msra.mxu0 0.0
    %741 = vmatprep.subr.mxu0 0.0
    %742 = vmatpush1.msra.mxu0 0.0
    %743 = vmatprep.subr.mxu0 0.0
    %744 = vmatpush1.msra.mxu0 0.0
    %745 = vmatprep.subr.mxu0 0.0
    %746 = vmatpush1.msra.mxu0 0.0
    %747 = vmatprep.subr.mxu0 0.0
    %748 = vmatpush1.msra.mxu0 0.0
    %749 = vmatprep.subr.mxu0 0.0
    %750 = vmatpush1.msra.mxu0 0.0
    %751 = vmatprep.subr.mxu0 0.0
    %752 = vmatpush1.msra.mxu0 0.0
    %753 = vmatprep.subr.mxu0 0.0
    %754 = vmatpush1.msra.mxu0 0.0
    %755 = vmatprep.subr.mxu0 0.0
    %756 = vmatpush1.msra.mxu0 0.0
    %757 = vmatprep.subr.mxu0 0.0
    %758 = vmatpush1.msra.mxu0 0.0
    %759 = vmatprep.subr.mxu0 0.0
    %760 = vmatpush1.msra.mxu0 0.0
    %761 = vmatprep.subr.mxu0 0.0
    %762 = vmatpush1.msra.mxu0 0.0
    %763 = vmatprep.subr.mxu0 0.0
    %764 = vmatpush1.msra.mxu0 0.0
    %765 = vmatprep.subr.mxu0 0.0
    %766 = vmatpush1.msra.mxu0 0.0
    %767 = vmatprep.mubr.f32.mxu0 0.0
    %768 = vmatmul.mubr.f32.gmra.mrb[0].mxu0 %v98
    %v769 = vpop.f32.mrb[0].mxu0
    %v770 = vadd.f32 0.0, %v769
    %v771 = vpop.f32.mrb[0].mxu0
    %772 = vmatprep.mubr.f32.mxu0 0.0
    %773 = vmatmul.mubr.f32.gmra.mrb[0].mxu0 %v101
    %v774 = vpop.f32.mrb[0].mxu0
    %v775 = vadd.f32 0.0, %v774
    %v776 = vpop.f32.mrb[0].mxu0
    %777 = vdwg.mxu0
    %778 = vmatprep.subr.mxu0 0.0
    %779 = vmatpush1.msra.mxu0 %v84
    %780 = vmatprep.subr.mxu0 0.0
    %781 = vmatpush1.msra.mxu0 %v85
    %782 = vmatprep.subr.mxu0 0.0
    %783 = vmatpush1.msra.mxu0 %v86
    %784 = vmatprep.subr.mxu0 0.0
    %785 = vmatpush1.msra.mxu0 %v87
    %786 = vmatprep.subr.mxu0 0.0
    %787 = vmatpush1.msra.mxu0 0.0
    %788 = vmatprep.subr.mxu0 0.0
    %789 = vmatpush1.msra.mxu0 0.0
    %790 = vmatprep.subr.mxu0 0.0
    %791 = vmatpush1.msra.mxu0 0.0
    %792 = vmatprep.subr.mxu0 0.0
    %793 = vmatpush1.msra.mxu0 0.0
    %794 = vmatprep.subr.mxu0 0.0
    %795 = vmatpush1.msra.mxu0 0.0
    %796 = vmatprep.subr.mxu0 0.0
    %797 = vmatpush1.msra.mxu0 0.0
    %798 = vmatprep.subr.mxu0 0.0
    %799 = vmatpush1.msra.mxu0 0.0
    %800 = vmatprep.subr.mxu0 0.0
    %801 = vmatpush1.msra.mxu0 0.0
    %802 = vmatprep.subr.mxu0 0.0
    %803 = vmatpush1.msra.mxu0 0.0
    %804 = vmatprep.subr.mxu0 0.0
    %805 = vmatpush1.msra.mxu0 0.0
    %806 = vmatprep.subr.mxu0 0.0
    %807 = vmatpush1.msra.mxu0 0.0
    %808 = vmatprep.subr.mxu0 0.0
    %809 = vmatpush1.msra.mxu0 0.0
    %810 = vmatprep.subr.mxu0 0.0
    %811 = vmatpush1.msra.mxu0 0.0
    %812 = vmatprep.subr.mxu0 0.0
    %813 = vmatpush1.msra.mxu0 0.0
    %814 = vmatprep.subr.mxu0 0.0
    %815 = vmatpush1.msra.mxu0 0.0
    %816 = vmatprep.subr.mxu0 0.0
    %817 = vmatpush1.msra.mxu0 0.0
    %818 = vmatprep.subr.mxu0 0.0
    %819 = vmatpush1.msra.mxu0 0.0
    %820 = vmatprep.subr.mxu0 0.0
    %821 = vmatpush1.msra.mxu0 0.0
    %822 = vmatprep.subr.mxu0 0.0
    %823 = vmatpush1.msra.mxu0 0.0
    %824 = vmatprep.subr.mxu0 0.0
    %825 = vmatpush1.msra.mxu0 0.0
    %826 = vmatprep.subr.mxu0 0.0
    %827 = vmatpush1.msra.mxu0 0.0
    %828 = vmatprep.subr.mxu0 0.0
    %829 = vmatpush1.msra.mxu0 0.0
    %830 = vmatprep.subr.mxu0 0.0
    %831 = vmatpush1.msra.mxu0 0.0
    %832 = vmatprep.subr.mxu0 0.0
    %833 = vmatpush1.msra.mxu0 0.0
    %834 = vmatprep.subr.mxu0 0.0
    %835 = vmatpush1.msra.mxu0 0.0
    %836 = vmatprep.subr.mxu0 0.0
    %837 = vmatpush1.msra.mxu0 0.0
    %838 = vmatprep.subr.mxu0 0.0
    %839 = vmatpush1.msra.mxu0 0.0
    %840 = vmatprep.subr.mxu0 0.0
    %841 = vmatpush1.msra.mxu0 0.0
    %842 = vmatprep.mubr.f32.mxu0 0.0
    %843 = vmatmul.mubr.f32.gmra.mrb[0].mxu0 %v98
    %v844 = vpop.f32.mrb[0].mxu0
    %v845 = vadd.f32 0.0, %v844
    %v846 = vpop.f32.mrb[0].mxu0
    %847 = vmatprep.mubr.f32.mxu0 0.0
    %848 = vmatmul.mubr.f32.gmra.mrb[0].mxu0 %v101
    %v849 = vpop.f32.mrb[0].mxu0
    %v850 = vadd.f32 0.0, %v849
    %v851 = vpop.f32.mrb[0].mxu0
    %852 = vdwg.mxu0
    %853 = vmatprep.subr.mxu0 0.0
    %854 = vmatpush1.msra.mxu0 %v88
    %855 = vmatprep.subr.mxu0 0.0
    %856 = vmatpush1.msra.mxu0 %v89
    %857 = vmatprep.subr.mxu0 0.0
    %858 = vmatpush1.msra.mxu0 %v90
    %859 = vmatprep.subr.mxu0 0.0
    %860 = vmatpush1.msra.mxu0 %v91
    %861 = vmatprep.subr.mxu0 0.0
    %862 = vmatpush1.msra.mxu0 0.0
    %863 = vmatprep.subr.mxu0 0.0
    %864 = vmatpush1.msra.mxu0 0.0
    %865 = vmatprep.subr.mxu0 0.0
    %866 = vmatpush1.msra.mxu0 0.0
    %867 = vmatprep.subr.mxu0 0.0
    %868 = vmatpush1.msra.mxu0 0.0
    %869 = vmatprep.subr.mxu0 0.0
    %870 = vmatpush1.msra.mxu0 0.0
    %871 = vmatprep.subr.mxu0 0.0
    %872 = vmatpush1.msra.mxu0 0.0
    %873 = vmatprep.subr.mxu0 0.0
    %874 = vmatpush1.msra.mxu0 0.0
    %875 = vmatprep.subr.mxu0 0.0
    %876 = vmatpush1.msra.mxu0 0.0
    %877 = vmatprep.subr.mxu0 0.0
    %878 = vmatpush1.msra.mxu0 0.0
    %879 = vmatprep.subr.mxu0 0.0
    %880 = vmatpush1.msra.mxu0 0.0
    %881 = vmatprep.subr.mxu0 0.0
    %882 = vmatpush1.msra.mxu0 0.0
    %883 = vmatprep.subr.mxu0 0.0
    %884 = vmatpush1.msra.mxu0 0.0
    %885 = vmatprep.subr.mxu0 0.0
    %886 = vmatpush1.msra.mxu0 0.0
    %887 = vmatprep.subr.mxu0 0.0
    %888 = vmatpush1.msra.mxu0 0.0
    %889 = vmatprep.subr.mxu0 0.0
    %890 = vmatpush1.msra.mxu0 0.0
    %891 = vmatprep.subr.mxu0 0.0
    %892 = vmatpush1.msra.mxu0 0.0
    %893 = vmatprep.subr.mxu0 0.0
    %894 = vmatpush1.msra.mxu0 0.0
    %895 = vmatprep.subr.mxu0 0.0
    %896 = vmatpush1.msra.mxu0 0.0
    %897 = vmatprep.subr.mxu0 0.0
    %898 = vmatpush1.msra.mxu0 0.0
    %899 = vmatprep.subr.mxu0 0.0
    %900 = vmatpush1.msra.mxu0 0.0
    %901 = vmatprep.subr.mxu0 0.0
    %902 = vmatpush1.msra.mxu0 0.0
    %903 = vmatprep.subr.mxu0 0.0
    %904 = vmatpush1.msra.mxu0 0.0
    %905 = vmatprep.subr.mxu0 0.0
    %906 = vmatpush1.msra.mxu0 0.0
    %907 = vmatprep.subr.mxu0 0.0
    %908 = vmatpush1.msra.mxu0 0.0
    %909 = vmatprep.subr.mxu0 0.0
    %910 = vmatpush1.msra.mxu0 0.0
    %911 = vmatprep.subr.mxu0 0.0
    %912 = vmatpush1.msra.mxu0 0.0
    %913 = vmatprep.subr.mxu0 0.0
    %914 = vmatpush1.msra.mxu0 0.0
    %915 = vmatprep.subr.mxu0 0.0
    %916 = vmatpush1.msra.mxu0 0.0
    %917 = vmatprep.mubr.f32.mxu0 0.0
    %918 = vmatmul.mubr.f32.gmra.mrb[0].mxu0 %v98
    %v919 = vpop.f32.mrb[0].mxu0
    %v920 = vadd.f32 0.0, %v919
    %v921 = vpop.f32.mrb[0].mxu0
    %922 = vmatprep.mubr.f32.mxu0 0.0
    %923 = vmatmul.mubr.f32.gmra.mrb[0].mxu0 %v101
    %v924 = vpop.f32.mrb[0].mxu0
    %v925 = vadd.f32 0.0, %v924
    %v926 = vpop.f32.mrb[0].mxu0
    %927 = vdwg.mxu0
    %928 = vmatprep.subr.mxu0 0.0
    %929 = vmatpush1.msra.mxu0 %v92
    %930 = vmatprep.subr.mxu0 0.0
    %931 = vmatpush1.msra.mxu0 %v93
    %932 = vmatprep.subr.mxu0 0.0
    %933 = vmatpush1.msra.mxu0 %v94
    %934 = vmatprep.subr.mxu0 0.0
    %935 = vmatpush1.msra.mxu0 %v95
    %936 = vmatprep.subr.mxu0 0.0
    %937 = vmatpush1.msra.mxu0 0.0
    %938 = vmatprep.subr.mxu0 0.0
    %939 = vmatpush1.msra.mxu0 0.0
    %940 = vmatprep.subr.mxu0 0.0
    %941 = vmatpush1.msra.mxu0 0.0
    %942 = vmatprep.subr.mxu0 0.0
    %943 = vmatpush1.msra.mxu0 0.0
    %944 = vmatprep.subr.mxu0 0.0
    %945 = vmatpush1.msra.mxu0 0.0
    %946 = vmatprep.subr.mxu0 0.0
    %947 = vmatpush1.msra.mxu0 0.0
    %948 = vmatprep.subr.mxu0 0.0
    %949 = vmatpush1.msra.mxu0 0.0
    %950 = vmatprep.subr.mxu0 0.0
    %951 = vmatpush1.msra.mxu0 0.0
    %952 = vmatprep.subr.mxu0 0.0
    %953 = vmatpush1.msra.mxu0 0.0
    %954 = vmatprep.subr.mxu0 0.0
    %955 = vmatpush1.msra.mxu0 0.0
    %956 = vmatprep.subr.mxu0 0.0
    %957 = vmatpush1.msra.mxu0 0.0
    %958 = vmatprep.subr.mxu0 0.0
    %959 = vmatpush1.msra.mxu0 0.0
    %960 = vmatprep.subr.mxu0 0.0
    %961 = vmatpush1.msra.mxu0 0.0
    %962 = vmatprep.subr.mxu0 0.0
    %963 = vmatpush1.msra.mxu0 0.0
    %964 = vmatprep.subr.mxu0 0.0
    %965 = vmatpush1.msra.mxu0 0.0
    %966 = vmatprep.subr.mxu0 0.0
    %967 = vmatpush1.msra.mxu0 0.0
    %968 = vmatprep.subr.mxu0 0.0
    %969 = vmatpush1.msra.mxu0 0.0
    %970 = vmatprep.subr.mxu0 0.0
    %971 = vmatpush1.msra.mxu0 0.0
    %972 = vmatprep.subr.mxu0 0.0
    %973 = vmatpush1.msra.mxu0 0.0
    %974 = vmatprep.subr.mxu0 0.0
    %975 = vmatpush1.msra.mxu0 0.0
    %976 = vmatprep.subr.mxu0 0.0
    %977 = vmatpush1.msra.mxu0 0.0
    %978 = vmatprep.subr.mxu0 0.0
    %979 = vmatpush1.msra.mxu0 0.0
    %980 = vmatprep.subr.mxu0 0.0
    %981 = vmatpush1.msra.mxu0 0.0
    %982 = vmatprep.subr.mxu0 0.0
    %983 = vmatpush1.msra.mxu0 0.0
    %984 = vmatprep.subr.mxu0 0.0
    %985 = vmatpush1.msra.mxu0 0.0
    %986 = vmatprep.subr.mxu0 0.0
    %987 = vmatpush1.msra.mxu0 0.0
    %988 = vmatprep.subr.mxu0 0.0
    %989 = vmatpush1.msra.mxu0 0.0
    %990 = vmatprep.subr.mxu0 0.0
    %991 = vmatpush1.msra.mxu0 0.0
    %992 = vmatprep.mubr.f32.mxu0 0.0
    %993 = vmatmul.mubr.f32.gmra.mrb[0].mxu0 %v98
    %v994 = vpop.f32.mrb[0].mxu0
    %v995 = vadd.f32 0.0, %v994
    %v996 = vpop.f32.mrb[0].mxu0
    %997 = vmatprep.mubr.f32.mxu0 0.0
    %998 = vmatmul.mubr.f32.gmra.mrb[0].mxu0 %v101
    %v999 = vpop.f32.mrb[0].mxu0
    %v1000 = vadd.f32 0.0, %v999
    %v1001 = vpop.f32.mrb[0].mxu0
    %1002 = vdwg.mxu0
    %v1003 = vlaneseq
    %v1004 = vshrl.u32 %v1003, 7
    %v1005 = vadd.s32 %v1004, 8
    %v1006 = vlaneseq
    %v1007 = vand.u32 %v1006, 127
    %s1008 = sld [smem:[#allocation3]]
    %vm1009 = vcmp.ge.s32.totalorder %v1004, 0
    %vm1010 = vcmp.ge.s32.totalorder %v1005, 0
    %vm1011 = vcmp.lt.s32.totalorder %v1004, 8
    %vm1012 = vcmp.lt.s32.totalorder %v1005, 8
    %vm1013 = vmand %vm1009, %vm1011
    %vm1014 = vmand %vm1010, %vm1012
    %vm1015 = vcmp.ge.s32.totalorder %v1007, 0
    %vm1016 = vcmp.lt.s32.totalorder %v1007, 8
    %vm1017 = vmand %vm1015, %vm1016
    %vm1018 = vmand %vm1013, %vm1017
    %vm1019 = vmand %vm1014, %vm1017
    %v1020 = vstv %s1008
    %vm1021 = vcmp.lt.s32.totalorder %v1007, %v1020
    %vm1022 = vmand %vm1018, %vm1021
    %vm1023 = vmand %vm1019, %vm1021
    %s1024 = sld [smem:[#allocation3 + $0x1]]
    %vm1025 = vcmp.ge.s32.totalorder %v1004, 8
    %vm1026 = vcmp.ge.s32.totalorder %v1005, 8
    %vm1027 = vcmp.lt.s32.totalorder %v1004, 16
    %vm1028 = vcmp.lt.s32.totalorder %v1005, 16
    %vm1029 = vmand %vm1025, %vm1027
    %vm1030 = vmand %vm1026, %vm1028
    %vm1031 = vcmp.ge.s32.totalorder %v1007, 8
    %vm1032 = vcmp.lt.s32.totalorder %v1007, 16
    %vm1033 = vmand %vm1031, %vm1032
    %vm1034 = vmand %vm1029, %vm1033
    %vm1035 = vmand %vm1030, %vm1033
    %s1036 = sadd.s32 %s1024, 8
    %v1037 = vstv %s1036
    %vm1038 = vcmp.lt.s32.totalorder %v1007, %v1037
    %vm1039 = vmand %vm1034, %vm1038
    %vm1040 = vmand %vm1035, %vm1038
    %vm1041 = vmor %vm1018, %vm1034
    %vm1042 = vmor %vm1019, %vm1035
    %vm1043 = vmor %vm1022, %vm1039
    %vm1044 = vmor %vm1023, %vm1040
    %v1045 = vsel %vm1041, -1000000.0, -1e+09
    %v1046 = vsel %vm1042, -1000000.0, -1e+09
    %v1047 = vsel %vm1043, 0.0, %v1045
    %v1048 = vsel %vm1044, 0.0, %v1046
    %vm1049 = vcmask 64512
    %v1051 = vsel %vm1049, %v170, 0
    %v1054 = vsel %vm1049, %v175, 0
    %v1057 = vsel %vm1049, %v470, 0
    %v1060 = vsel %vm1049, %v475, 0
    %1062 = vmatprep.subr.mxu0 0.0
    %1063 = vmatpush1.xpose.msra.mxu0 %v1057
    %1064 = vmatprep.subr.mxu0 0.0
    %1065 = vmatpush1.xpose.msra.mxu0 %v1060
    %1066 = vmatprep.subr.mxu0 0.0
    %1067 = vmatpush1.xpose.msra.mxu0 0.0
    %1068 = vmatprep.subr.mxu0 0.0
    %1069 = vmatpush1.xpose.msra.mxu0 0.0
    %1070 = vmatprep.subr.mxu0 0.0
    %1071 = vmatpush1.xpose.msra.mxu0 0.0
    %1072 = vmatprep.subr.mxu0 0.0
    %1073 = vmatpush1.xpose.msra.mxu0 0.0
    %1074 = vmatprep.subr.mxu0 0.0
    %1075 = vmatpush1.xpose.msra.mxu0 0.0
    %1076 = vmatprep.subr.mxu0 0.0
    %1077 = vmatpush1.xpose.msra.mxu0 0.0
    %1078 = vmatprep.subr.mxu0 0.0
    %1079 = vmatpush1.xpose.msra.mxu0 0.0
    %1080 = vmatprep.subr.mxu0 0.0
    %1081 = vmatpush1.xpose.msra.mxu0 0.0
    %1082 = vmatprep.subr.mxu0 0.0
    %1083 = vmatpush1.xpose.msra.mxu0 0.0
    %1084 = vmatprep.subr.mxu0 0.0
    %1085 = vmatpush1.xpose.msra.mxu0 0.0
    %1086 = vmatprep.subr.mxu0 0.0
    %1087 = vmatpush1.xpose.msra.mxu0 0.0
    %1088 = vmatprep.subr.mxu0 0.0
    %1089 = vmatpush1.xpose.msra.mxu0 0.0
    %1090 = vmatprep.subr.mxu0 0.0
    %1091 = vmatpush1.xpose.msra.mxu0 0.0
    %1092 = vmatprep.subr.mxu0 0.0
    %1093 = vmatpush1.xpose.msra.mxu0 0.0
    %1094 = vmatprep.subr.mxu0 0.0
    %1095 = vmatpush1.xpose.msra.mxu0 0.0
    %1096 = vmatprep.subr.mxu0 0.0
    %1097 = vmatpush1.xpose.msra.mxu0 0.0
    %1098 = vmatprep.subr.mxu0 0.0
    %1099 = vmatpush1.xpose.msra.mxu0 0.0
    %1100 = vmatprep.subr.mxu0 0.0
    %1101 = vmatpush1.xpose.msra.mxu0 0.0
    %1102 = vmatprep.subr.mxu0 0.0
    %1103 = vmatpush1.xpose.msra.mxu0 0.0
    %1104 = vmatprep.subr.mxu0 0.0
    %1105 = vmatpush1.xpose.msra.mxu0 0.0
    %1106 = vmatprep.subr.mxu0 0.0
    %1107 = vmatpush1.xpose.msra.mxu0 0.0
    %1108 = vmatprep.subr.mxu0 0.0
    %1109 = vmatpush1.xpose.msra.mxu0 0.0
    %1110 = vmatprep.subr.mxu0 0.0
    %1111 = vmatpush1.xpose.msra.mxu0 0.0
    %1112 = vmatprep.subr.mxu0 0.0
    %1113 = vmatpush1.xpose.msra.mxu0 0.0
    %1114 = vmatprep.subr.mxu0 0.0
    %1115 = vmatpush1.xpose.msra.mxu0 0.0
    %1116 = vmatprep.subr.mxu0 0.0
    %1117 = vmatpush1.xpose.msra.mxu0 0.0
    %1118 = vmatprep.subr.mxu0 0.0
    %1119 = vmatpush1.xpose.msra.mxu0 0.0
    %1120 = vmatprep.subr.mxu0 0.0
    %1121 = vmatpush1.xpose.msra.mxu0 0.0
    %1122 = vmatprep.subr.mxu0 0.0
    %1123 = vmatpush1.xpose.msra.mxu0 0.0
    %1124 = vmatprep.subr.mxu0 0.0
    %1125 = vmatpush1.xpose.msra.mxu0 0.0
    %1126 = vmatprep.mubr.f32.mxu0 0.0
    %1127 = vmatmul.mubr.f32.gmra.mrb[0].mxu0 %v1051
    %v1128 = vpop.f32.mrb[0].mxu0
    %v1129 = vadd.f32 0.0, %v1128
    %v1130 = vpop.f32.mrb[0].mxu0
    %1131 = vmatprep.mubr.f32.mxu0 0.0
    %1132 = vmatmul.mubr.f32.gmra.mrb[0].mxu0 %v1054
    %v1133 = vpop.f32.mrb[0].mxu0
    %v1134 = vadd.f32 0.0, %v1133
    %v1135 = vpop.f32.mrb[0].mxu0
    %1136 = vdwg.mxu0
    %v1138 = vsel %vm1049, %v245, 0
    %v1141 = vsel %vm1049, %v250, 0
    %v1144 = vsel %vm1049, %v545, 0
    %v1147 = vsel %vm1049, %v550, 0
    %1149 = vmatprep.subr.mxu0 0.0
    %1150 = vmatpush1.xpose.msra.mxu0 %v1144
    %1151 = vmatprep.subr.mxu0 0.0
    %1152 = vmatpush1.xpose.msra.mxu0 %v1147
    %1153 = vmatprep.subr.mxu0 0.0
    %1154 = vmatpush1.xpose.msra.mxu0 0.0
    %1155 = vmatprep.subr.mxu0 0.0
    %1156 = vmatpush1.xpose.msra.mxu0 0.0
    %1157 = vmatprep.subr.mxu0 0.0
    %1158 = vmatpush1.xpose.msra.mxu0 0.0
    %1159 = vmatprep.subr.mxu0 0.0
    %1160 = vmatpush1.xpose.msra.mxu0 0.0
    %1161 = vmatprep.subr.mxu0 0.0
    %1162 = vmatpush1.xpose.msra.mxu0 0.0
    %1163 = vmatprep.subr.mxu0 0.0
    %1164 = vmatpush1.xpose.msra.mxu0 0.0
    %1165 = vmatprep.subr.mxu0 0.0
    %1166 = vmatpush1.xpose.msra.mxu0 0.0
    %1167 = vmatprep.subr.mxu0 0.0
    %1168 = vmatpush1.xpose.msra.mxu0 0.0
    %1169 = vmatprep.subr.mxu0 0.0
    %1170 = vmatpush1.xpose.msra.mxu0 0.0
    %1171 = vmatprep.subr.mxu0 0.0
    %1172 = vmatpush1.xpose.msra.mxu0 0.0
    %1173 = vmatprep.subr.mxu0 0.0
    %1174 = vmatpush1.xpose.msra.mxu0 0.0
    %1175 = vmatprep.subr.mxu0 0.0
    %1176 = vmatpush1.xpose.msra.mxu0 0.0
    %1177 = vmatprep.subr.mxu0 0.0
    %1178 = vmatpush1.xpose.msra.mxu0 0.0
    %1179 = vmatprep.subr.mxu0 0.0
    %1180 = vmatpush1.xpose.msra.mxu0 0.0
    %1181 = vmatprep.subr.mxu0 0.0
    %1182 = vmatpush1.xpose.msra.mxu0 0.0
    %1183 = vmatprep.subr.mxu0 0.0
    %1184 = vmatpush1.xpose.msra.mxu0 0.0
    %1185 = vmatprep.subr.mxu0 0.0
    %1186 = vmatpush1.xpose.msra.mxu0 0.0
    %1187 = vmatprep.subr.mxu0 0.0
    %1188 = vmatpush1.xpose.msra.mxu0 0.0
    %1189 = vmatprep.subr.mxu0 0.0
    %1190 = vmatpush1.xpose.msra.mxu0 0.0
    %1191 = vmatprep.subr.mxu0 0.0
    %1192 = vmatpush1.xpose.msra.mxu0 0.0
    %1193 = vmatprep.subr.mxu0 0.0
    %1194 = vmatpush1.xpose.msra.mxu0 0.0
    %1195 = vmatprep.subr.mxu0 0.0
    %1196 = vmatpush1.xpose.msra.mxu0 0.0
    %1197 = vmatprep.subr.mxu0 0.0
    %1198 = vmatpush1.xpose.msra.mxu0 0.0
    %1199 = vmatprep.subr.mxu0 0.0
    %1200 = vmatpush1.xpose.msra.mxu0 0.0
    %1201 = vmatprep.subr.mxu0 0.0
    %1202 = vmatpush1.xpose.msra.mxu0 0.0
    %1203 = vmatprep.subr.mxu0 0.0
    %1204 = vmatpush1.xpose.msra.mxu0 0.0
    %1205 = vmatprep.subr.mxu0 0.0
    %1206 = vmatpush1.xpose.msra.mxu0 0.0
    %1207 = vmatprep.subr.mxu0 0.0
    %1208 = vmatpush1.xpose.msra.mxu0 0.0
    %1209 = vmatprep.subr.mxu0 0.0
    %1210 = vmatpush1.xpose.msra.mxu0 0.0
    %1211 = vmatprep.subr.mxu0 0.0
    %1212 = vmatpush1.xpose.msra.mxu0 0.0
    %1213 = vmatprep.mubr.f32.mxu0 0.0
    %1214 = vmatmul.mubr.f32.gmra.mrb[0].mxu0 %v1138
    %v1215 = vpop.f32.mrb[0].mxu0
    %v1216 = vadd.f32 0.0, %v1215
    %v1217 = vpop.f32.mrb[0].mxu0
    %1218 = vmatprep.mubr.f32.mxu0 0.0
    %1219 = vmatmul.mubr.f32.gmra.mrb[0].mxu0 %v1141
    %v1220 = vpop.f32.mrb[0].mxu0
    %v1221 = vadd.f32 0.0, %v1220
    %v1222 = vpop.f32.mrb[0].mxu0
    %1223 = vdwg.mxu0
    %v1225 = vsel %vm1049, %v320, 0
    %v1228 = vsel %vm1049, %v325, 0
    %v1231 = vsel %vm1049, %v620, 0
    %v1234 = vsel %vm1049, %v625, 0
    %1236 = vmatprep.subr.mxu0 0.0
    %1237 = vmatpush1.xpose.msra.mxu0 %v1231
    %1238 = vmatprep.subr.mxu0 0.0
    %1239 = vmatpush1.xpose.msra.mxu0 %v1234
    %1240 = vmatprep.subr.mxu0 0.0
    %1241 = vmatpush1.xpose.msra.mxu0 0.0
    %1242 = vmatprep.subr.mxu0 0.0
    %1243 = vmatpush1.xpose.msra.mxu0 0.0
    %1244 = vmatprep.subr.mxu0 0.0
    %1245 = vmatpush1.xpose.msra.mxu0 0.0
    %1246 = vmatprep.subr.mxu0 0.0
    %1247 = vmatpush1.xpose.msra.mxu0 0.0
    %1248 = vmatprep.subr.mxu0 0.0
    %1249 = vmatpush1.xpose.msra.mxu0 0.0
    %1250 = vmatprep.subr.mxu0 0.0
    %1251 = vmatpush1.xpose.msra.mxu0 0.0
    %1252 = vmatprep.subr.mxu0 0.0
    %1253 = vmatpush1.xpose.msra.mxu0 0.0
    %1254 = vmatprep.subr.mxu0 0.0
    %1255 = vmatpush1.xpose.msra.mxu0 0.0
    %1256 = vmatprep.subr.mxu0 0.0
    %1257 = vmatpush1.xpose.msra.mxu0 0.0
    %1258 = vmatprep.subr.mxu0 0.0
    %1259 = vmatpush1.xpose.msra.mxu0 0.0
    %1260 = vmatprep.subr.mxu0 0.0
    %1261 = vmatpush1.xpose.msra.mxu0 0.0
    %1262 = vmatprep.subr.mxu0 0.0
    %1263 = vmatpush1.xpose.msra.mxu0 0.0
    %1264 = vmatprep.subr.mxu0 0.0
    %1265 = vmatpush1.xpose.msra.mxu0 0.0
    %1266 = vmatprep.subr.mxu0 0.0
    %1267 = vmatpush1.xpose.msra.mxu0 0.0
    %1268 = vmatprep.subr.mxu0 0.0
    %1269 = vmatpush1.xpose.msra.mxu0 0.0
    %1270 = vmatprep.subr.mxu0 0.0
    %1271 = vmatpush1.xpose.msra.mxu0 0.0
    %1272 = vmatprep.subr.mxu0 0.0
    %1273 = vmatpush1.xpose.msra.mxu0 0.0
    %1274 = vmatprep.subr.mxu0 0.0
    %1275 = vmatpush1.xpose.msra.mxu0 0.0
    %1276 = vmatprep.subr.mxu0 0.0
    %1277 = vmatpush1.xpose.msra.mxu0 0.0
    %1278 = vmatprep.subr.mxu0 0.0
    %1279 = vmatpush1.xpose.msra.mxu0 0.0
    %1280 = vmatprep.subr.mxu0 0.0
    %1281 = vmatpush1.xpose.msra.mxu0 0.0
    %1282 = vmatprep.subr.mxu0 0.0
    %1283 = vmatpush1.xpose.msra.mxu0 0.0
    %1284 = vmatprep.subr.mxu0 0.0
    %1285 = vmatpush1.xpose.msra.mxu0 0.0
    %1286 = vmatprep.subr.mxu0 0.0
    %1287 = vmatpush1.xpose.msra.mxu0 0.0
    %1288 = vmatprep.subr.mxu0 0.0
    %1289 = vmatpush1.xpose.msra.mxu0 0.0
    %1290 = vmatprep.subr.mxu0 0.0
    %1291 = vmatpush1.xpose.msra.mxu0 0.0
    %1292 = vmatprep.subr.mxu0 0.0
    %1293 = vmatpush1.xpose.msra.mxu0 0.0
    %1294 = vmatprep.subr.mxu0 0.0
    %1295 = vmatpush1.xpose.msra.mxu0 0.0
    %1296 = vmatprep.subr.mxu0 0.0
    %1297 = vmatpush1.xpose.msra.mxu0 0.0
    %1298 = vmatprep.subr.mxu0 0.0
    %1299 = vmatpush1.xpose.msra.mxu0 0.0
    %1300 = vmatprep.mubr.f32.mxu0 0.0
    %1301 = vmatmul.mubr.f32.gmra.mrb[0].mxu0 %v1225
    %v1302 = vpop.f32.mrb[0].mxu0
    %v1303 = vadd.f32 0.0, %v1302
    %v1304 = vpop.f32.mrb[0].mxu0
    %1305 = vmatprep.mubr.f32.mxu0 0.0
    %1306 = vmatmul.mubr.f32.gmra.mrb[0].mxu0 %v1228
    %v1307 = vpop.f32.mrb[0].mxu0
    %v1308 = vadd.f32 0.0, %v1307
    %v1309 = vpop.f32.mrb[0].mxu0
    %1310 = vdwg.mxu0
    %v1312 = vsel %vm1049, %v395, 0
    %v1315 = vsel %vm1049, %v400, 0
    %v1318 = vsel %vm1049, %v695, 0
    %v1321 = vsel %vm1049, %v700, 0
    %1323 = vmatprep.subr.mxu0 0.0
    %1324 = vmatpush1.xpose.msra.mxu0 %v1318
    %1325 = vmatprep.subr.mxu0 0.0
    %1326 = vmatpush1.xpose.msra.mxu0 %v1321
    %1327 = vmatprep.subr.mxu0 0.0
    %1328 = vmatpush1.xpose.msra.mxu0 0.0
    %1329 = vmatprep.subr.mxu0 0.0
    %1330 = vmatpush1.xpose.msra.mxu0 0.0
    %1331 = vmatprep.subr.mxu0 0.0
    %1332 = vmatpush1.xpose.msra.mxu0 0.0
    %1333 = vmatprep.subr.mxu0 0.0
    %1334 = vmatpush1.xpose.msra.mxu0 0.0
    %1335 = vmatprep.subr.mxu0 0.0
    %1336 = vmatpush1.xpose.msra.mxu0 0.0
    %1337 = vmatprep.subr.mxu0 0.0
    %1338 = vmatpush1.xpose.msra.mxu0 0.0
    %1339 = vmatprep.subr.mxu0 0.0
    %1340 = vmatpush1.xpose.msra.mxu0 0.0
    %1341 = vmatprep.subr.mxu0 0.0
    %1342 = vmatpush1.xpose.msra.mxu0 0.0
    %1343 = vmatprep.subr.mxu0 0.0
    %1344 = vmatpush1.xpose.msra.mxu0 0.0
    %1345 = vmatprep.subr.mxu0 0.0
    %1346 = vmatpush1.xpose.msra.mxu0 0.0
    %1347 = vmatprep.subr.mxu0 0.0
    %1348 = vmatpush1.xpose.msra.mxu0 0.0
    %1349 = vmatprep.subr.mxu0 0.0
    %1350 = vmatpush1.xpose.msra.mxu0 0.0
    %1351 = vmatprep.subr.mxu0 0.0
    %1352 = vmatpush1.xpose.msra.mxu0 0.0
    %1353 = vmatprep.subr.mxu0 0.0
    %1354 = vmatpush1.xpose.msra.mxu0 0.0
    %1355 = vmatprep.subr.mxu0 0.0
    %1356 = vmatpush1.xpose.msra.mxu0 0.0
    %1357 = vmatprep.subr.mxu0 0.0
    %1358 = vmatpush1.xpose.msra.mxu0 0.0
    %1359 = vmatprep.subr.mxu0 0.0
    %1360 = vmatpush1.xpose.msra.mxu0 0.0
    %1361 = vmatprep.subr.mxu0 0.0
    %1362 = vmatpush1.xpose.msra.mxu0 0.0
    %1363 = vmatprep.subr.mxu0 0.0
    %1364 = vmatpush1.xpose.msra.mxu0 0.0
    %1365 = vmatprep.subr.mxu0 0.0
    %1366 = vmatpush1.xpose.msra.mxu0 0.0
    %1367 = vmatprep.subr.mxu0 0.0
    %1368 = vmatpush1.xpose.msra.mxu0 0.0
    %1369 = vmatprep.subr.mxu0 0.0
    %1370 = vmatpush1.xpose.msra.mxu0 0.0
    %1371 = vmatprep.subr.mxu0 0.0
    %1372 = vmatpush1.xpose.msra.mxu0 0.0
    %1373 = vmatprep.subr.mxu0 0.0
    %1374 = vmatpush1.xpose.msra.mxu0 0.0
    %1375 = vmatprep.subr.mxu0 0.0
    %1376 = vmatpush1.xpose.msra.mxu0 0.0
    %1377 = vmatprep.subr.mxu0 0.0
    %1378 = vmatpush1.xpose.msra.mxu0 0.0
    %1379 = vmatprep.subr.mxu0 0.0
    %1380 = vmatpush1.xpose.msra.mxu0 0.0
    %1381 = vmatprep.subr.mxu0 0.0
    %1382 = vmatpush1.xpose.msra.mxu0 0.0
    %1383 = vmatprep.subr.mxu0 0.0
    %1384 = vmatpush1.xpose.msra.mxu0 0.0
    %1385 = vmatprep.subr.mxu0 0.0
    %1386 = vmatpush1.xpose.msra.mxu0 0.0
    %1387 = vmatprep.mubr.f32.mxu0 0.0
    %1388 = vmatmul.mubr.f32.gmra.mrb[0].mxu0 %v1312
    %v1389 = vpop.f32.mrb[0].mxu0
    %v1390 = vadd.f32 0.0, %v1389
    %v1391 = vpop.f32.mrb[0].mxu0
    %1392 = vmatprep.mubr.f32.mxu0 0.0
    %1393 = vmatmul.mubr.f32.gmra.mrb[0].mxu0 %v1315
    %v1394 = vpop.f32.mrb[0].mxu0
    %v1395 = vadd.f32 0.0, %v1394
    %v1396 = vpop.f32.mrb[0].mxu0
    %1397 = vdwg.mxu0
    %v1398 = vmul.f32 %v1129, 0.35355338
    %v1399 = vmul.f32 %v1134, 0.35355338
    %v1400 = vmul.f32 %v1216, 0.35355338
    %v1401 = vmul.f32 %v1221, 0.35355338
    %v1402 = vmul.f32 %v1303, 0.35355338
    %v1403 = vmul.f32 %v1308, 0.35355338
    %v1404 = vmul.f32 %v1390, 0.35355338
    %v1405 = vmul.f32 %v1395, 0.35355338
    %v1406 = vadd.f32 %v1398, %v1047
    %v1407 = vadd.f32 %v1399, %v1048
    %v1408 = vadd.f32 %v1400, %v1047
    %v1409 = vadd.f32 %v1401, %v1048
    %v1410 = vadd.f32 %v1402, %v1047
    %v1411 = vadd.f32 %v1403, %v1048
    %v1412 = vadd.f32 %v1404, %v1047
    %v1413 = vadd.f32 %v1405, %v1048
    %vm1414 = vcmask 130048
    %v1415 = vsel %vm1414, %v1406, -inf
    %1416 = vmax.xlane.f32.xlu0 %v1415
    %v1417 = vpop.xlane.xlu0 %1416
    %v1418 = vsel %vm1414, %v1407, -inf
    %1419 = vmax.xlane.f32.xlu0 %v1418
    %v1420 = vpop.xlane.xlu0 %1419
    %v1421 = vsel %vm1414, %v1408, -inf
    %1422 = vmax.xlane.f32.xlu0 %v1421
    %v1423 = vpop.xlane.xlu0 %1422
    %v1424 = vsel %vm1414, %v1409, -inf
    %1425 = vmax.xlane.f32.xlu0 %v1424
    %v1426 = vpop.xlane.xlu0 %1425
    %v1427 = vsel %vm1414, %v1410, -inf
    %1428 = vmax.xlane.f32.xlu0 %v1427
    %v1429 = vpop.xlane.xlu0 %1428
    %v1430 = vsel %vm1414, %v1411, -inf
    %1431 = vmax.xlane.f32.xlu0 %v1430
    %v1432 = vpop.xlane.xlu0 %1431
    %v1433 = vsel %vm1414, %v1412, -inf
    %1434 = vmax.xlane.f32.xlu0 %v1433
    %v1435 = vpop.xlane.xlu0 %1434
    %v1436 = vsel %vm1414, %v1413, -inf
    %1437 = vmax.xlane.f32.xlu0 %v1436
    %v1438 = vpop.xlane.xlu0 %1437
    %v1439 = vsub.f32 %v1406, %v1417
    %v1440 = vsub.f32 %v1407, %v1420
    %v1441 = vsub.f32 %v1408, %v1423
    %v1442 = vsub.f32 %v1409, %v1426
    %v1443 = vsub.f32 %v1410, %v1429
    %v1444 = vsub.f32 %v1411, %v1432
    %v1445 = vsub.f32 %v1412, %v1435
    %v1446 = vsub.f32 %v1413, %v1438
    %v1447 = vmul.f32 %v1439, 1.442695
    %v1448 = vpow.pop %v1447
    %v1449 = vmul.f32 %v1440, 1.442695
    %v1450 = vpow.pop %v1449
    %v1451 = vmul.f32 %v1441, 1.442695
    %v1452 = vpow.pop %v1451
    %v1453 = vmul.f32 %v1442, 1.442695
    %v1454 = vpow.pop %v1453
    %v1455 = vmul.f32 %v1443, 1.442695
    %v1456 = vpow.pop %v1455
    %v1457 = vmul.f32 %v1444, 1.442695
    %v1458 = vpow.pop %v1457
    %v1459 = vmul.f32 %v1445, 1.442695
    %v1460 = vpow.pop %v1459
    %v1461 = vmul.f32 %v1446, 1.442695
    %v1462 = vpow.pop %v1461
    %v1463 = vsel %vm1414, %v1448, 0.0
    %1464 = vadd.xlane.f32.xlu0 %v1463
    %v1465 = vpop.xlane.xlu0 %1464
    %v1466 = vsel %vm1414, %v1450, 0.0
    %1467 = vadd.xlane.f32.xlu0 %v1466
    %v1468 = vpop.xlane.xlu0 %1467
    %v1469 = vsel %vm1414, %v1452, 0.0
    %1470 = vadd.xlane.f32.xlu0 %v1469
    %v1471 = vpop.xlane.xlu0 %1470
    %v1472 = vsel %vm1414, %v1454, 0.0
    %1473 = vadd.xlane.f32.xlu0 %v1472
    %v1474 = vpop.xlane.xlu0 %1473
    %v1475 = vsel %vm1414, %v1456, 0.0
    %1476 = vadd.xlane.f32.xlu0 %v1475
    %v1477 = vpop.xlane.xlu0 %1476
    %v1478 = vsel %vm1414, %v1458, 0.0
    %1479 = vadd.xlane.f32.xlu0 %v1478
    %v1480 = vpop.xlane.xlu0 %1479
    %v1481 = vsel %vm1414, %v1460, 0.0
    %1482 = vadd.xlane.f32.xlu0 %v1481
    %v1483 = vpop.xlane.xlu0 %1482
    %v1484 = vsel %vm1414, %v1462, 0.0
    %1485 = vadd.xlane.f32.xlu0 %v1484
    %v1486 = vpop.xlane.xlu0 %1485
    %v1487 = vrcp.pop %v1465
    %v1488 = vrcp.pop %v1468
    %v1489 = vrcp.pop %v1471
    %v1490 = vrcp.pop %v1474
    %v1491 = vrcp.pop %v1477
    %v1492 = vrcp.pop %v1480
    %v1493 = vrcp.pop %v1483
    %v1494 = vrcp.pop %v1486
    %v1495 = vmul.f32 %v1448, %v1487
    %v1496 = vmul.f32 %v1450, %v1488
    %v1497 = vmul.f32 %v1452, %v1489
    %v1498 = vmul.f32 %v1454, %v1490
    %v1499 = vmul.f32 %v1456, %v1491
    %v1500 = vmul.f32 %v1458, %v1492
    %v1501 = vmul.f32 %v1460, %v1493
    %v1502 = vmul.f32 %v1462, %v1494
    %v1504 = vsel %vm1414, %v1495, 0
    %v1507 = vsel %vm1414, %v1496, 0
    %1509 = vmatprep.subr.mxu0 0.0
    %1510 = vmatpush1.msra.mxu0 %v770
    %1511 = vmatprep.subr.mxu0 0.0
    %1512 = vmatpush1.msra.mxu0 %v775
    %1513 = vmatprep.subr.mxu0 0.0
    %1514 = vmatpush1.msra.mxu0 0.0
    %1515 = vmatprep.subr.mxu0 0.0
    %1516 = vmatpush1.msra.mxu0 0.0
    %1517 = vmatprep.subr.mxu0 0.0
    %1518 = vmatpush1.msra.mxu0 0.0
    %1519 = vmatprep.subr.mxu0 0.0
    %1520 = vmatpush1.msra.mxu0 0.0
    %1521 = vmatprep.subr.mxu0 0.0
    %1522 = vmatpush1.msra.mxu0 0.0
    %1523 = vmatprep.subr.mxu0 0.0
    %1524 = vmatpush1.msra.mxu0 0.0
    %1525 = vmatprep.subr.mxu0 0.0
    %1526 = vmatpush1.msra.mxu0 0.0
    %1527 = vmatprep.subr.mxu0 0.0
    %1528 = vmatpush1.msra.mxu0 0.0
    %1529 = vmatprep.subr.mxu0 0.0
    %1530 = vmatpush1.msra.mxu0 0.0
    %1531 = vmatprep.subr.mxu0 0.0
    %1532 = vmatpush1.msra.mxu0 0.0
    %1533 = vmatprep.subr.mxu0 0.0
    %1534 = vmatpush1.msra.mxu0 0.0
    %1535 = vmatprep.subr.mxu0 0.0
    %1536 = vmatpush1.msra.mxu0 0.0
    %1537 = vmatprep.subr.mxu0 0.0
    %1538 = vmatpush1.msra.mxu0 0.0
    %1539 = vmatprep.subr.mxu0 0.0
    %1540 = vmatpush1.msra.mxu0 0.0
    %1541 = vmatprep.subr.mxu0 0.0
    %1542 = vmatpush1.msra.mxu0 0.0
    %1543 = vmatprep.subr.mxu0 0.0
    %1544 = vmatpush1.msra.mxu0 0.0
    %1545 = vmatprep.subr.mxu0 0.0
    %1546 = vmatpush1.msra.mxu0 0.0
    %1547 = vmatprep.subr.mxu0 0.0
    %1548 = vmatpush1.msra.mxu0 0.0
    %1549 = vmatprep.subr.mxu0 0.0
    %1550 = vmatpush1.msra.mxu0 0.0
    %1551 = vmatprep.subr.mxu0 0.0
    %1552 = vmatpush1.msra.mxu0 0.0
    %1553 = vmatprep.subr.mxu0 0.0
    %1554 = vmatpush1.msra.mxu0 0.0
    %1555 = vmatprep.subr.mxu0 0.0
    %1556 = vmatpush1.msra.mxu0 0.0
    %1557 = vmatprep.subr.mxu0 0.0
    %1558 = vmatpush1.msra.mxu0 0.0
    %1559 = vmatprep.subr.mxu0 0.0
    %1560 = vmatpush1.msra.mxu0 0.0
    %1561 = vmatprep.subr.mxu0 0.0
    %1562 = vmatpush1.msra.mxu0 0.0
    %1563 = vmatprep.subr.mxu0 0.0
    %1564 = vmatpush1.msra.mxu0 0.0
    %1565 = vmatprep.subr.mxu0 0.0
    %1566 = vmatpush1.msra.mxu0 0.0
    %1567 = vmatprep.subr.mxu0 0.0
    %1568 = vmatpush1.msra.mxu0 0.0
    %1569 = vmatprep.subr.mxu0 0.0
    %1570 = vmatpush1.msra.mxu0 0.0
    %1571 = vmatprep.subr.mxu0 0.0
    %1572 = vmatpush1.msra.mxu0 0.0
    %1573 = vmatprep.mubr.f32.mxu0 0.0
    %1574 = vmatmul.mubr.f32.gmra.mrb[0].mxu0 %v1504
    %v1575 = vpop.f32.mrb[0].mxu0
    %v1576 = vadd.f32 0.0, %v1575
    %v1577 = vpop.f32.mrb[0].mxu0
    %1578 = vmatprep.mubr.f32.mxu0 0.0
    %1579 = vmatmul.mubr.f32.gmra.mrb[0].mxu0 %v1507
    %v1580 = vpop.f32.mrb[0].mxu0
    %v1581 = vadd.f32 0.0, %v1580
    %v1582 = vpop.f32.mrb[0].mxu0
    %1583 = vdwg.mxu0
    %v1585 = vsel %vm1414, %v1497, 0
    %v1588 = vsel %vm1414, %v1498, 0
    %1590 = vmatprep.subr.mxu0 0.0
    %1591 = vmatpush1.msra.mxu0 %v845
    %1592 = vmatprep.subr.mxu0 0.0
    %1593 = vmatpush1.msra.mxu0 %v850
    %1594 = vmatprep.subr.mxu0 0.0
    %1595 = vmatpush1.msra.mxu0 0.0
    %1596 = vmatprep.subr.mxu0 0.0
    %1597 = vmatpush1.msra.mxu0 0.0
    %1598 = vmatprep.subr.mxu0 0.0
    %1599 = vmatpush1.msra.mxu0 0.0
    %1600 = vmatprep.subr.mxu0 0.0
    %1601 = vmatpush1.msra.mxu0 0.0
    %1602 = vmatprep.subr.mxu0 0.0
    %1603 = vmatpush1.msra.mxu0 0.0
    %1604 = vmatprep.subr.mxu0 0.0
    %1605 = vmatpush1.msra.mxu0 0.0
    %1606 = vmatprep.subr.mxu0 0.0
    %1607 = vmatpush1.msra.mxu0 0.0
    %1608 = vmatprep.subr.mxu0 0.0
    %1609 = vmatpush1.msra.mxu0 0.0
    %1610 = vmatprep.subr.mxu0 0.0
    %1611 = vmatpush1.msra.mxu0 0.0
    %1612 = vmatprep.subr.mxu0 0.0
    %1613 = vmatpush1.msra.mxu0 0.0
    %1614 = vmatprep.subr.mxu0 0.0
    %1615 = vmatpush1.msra.mxu0 0.0
    %1616 = vmatprep.subr.mxu0 0.0
    %1617 = vmatpush1.msra.mxu0 0.0
    %1618 = vmatprep.subr.mxu0 0.0
    %1619 = vmatpush1.msra.mxu0 0.0
    %1620 = vmatprep.subr.mxu0 0.0
    %1621 = vmatpush1.msra.mxu0 0.0
    %1622 = vmatprep.subr.mxu0 0.0
    %1623 = vmatpush1.msra.mxu0 0.0
    %1624 = vmatprep.subr.mxu0 0.0
    %1625 = vmatpush1.msra.mxu0 0.0
    %1626 = vmatprep.subr.mxu0 0.0
    %1627 = vmatpush1.msra.mxu0 0.0
    %1628 = vmatprep.subr.mxu0 0.0
    %1629 = vmatpush1.msra.mxu0 0.0
    %1630 = vmatprep.subr.mxu0 0.0
    %1631 = vmatpush1.msra.mxu0 0.0
    %1632 = vmatprep.subr.mxu0 0.0
    %1633 = vmatpush1.msra.mxu0 0.0
    %1634 = vmatprep.subr.mxu0 0.0
    %1635 = vmatpush1.msra.mxu0 0.0
    %1636 = vmatprep.subr.mxu0 0.0
    %1637 = vmatpush1.msra.mxu0 0.0
    %1638 = vmatprep.subr.mxu0 0.0
    %1639 = vmatpush1.msra.mxu0 0.0
    %1640 = vmatprep.subr.mxu0 0.0
    %1641 = vmatpush1.msra.mxu0 0.0
    %1642 = vmatprep.subr.mxu0 0.0
    %1643 = vmatpush1.msra.mxu0 0.0
    %1644 = vmatprep.subr.mxu0 0.0
    %1645 = vmatpush1.msra.mxu0 0.0
    %1646 = vmatprep.subr.mxu0 0.0
    %1647 = vmatpush1.msra.mxu0 0.0
    %1648 = vmatprep.subr.mxu0 0.0
    %1649 = vmatpush1.msra.mxu0 0.0
    %1650 = vmatprep.subr.mxu0 0.0
    %1651 = vmatpush1.msra.mxu0 0.0
    %1652 = vmatprep.subr.mxu0 0.0
    %1653 = vmatpush1.msra.mxu0 0.0
    %1654 = vmatprep.mubr.f32.mxu0 0.0
    %1655 = vmatmul.mubr.f32.gmra.mrb[0].mxu0 %v1585
    %v1656 = vpop.f32.mrb[0].mxu0
    %v1657 = vadd.f32 0.0, %v1656
    %v1658 = vpop.f32.mrb[0].mxu0
    %1659 = vmatprep.mubr.f32.mxu0 0.0
    %1660 = vmatmul.mubr.f32.gmra.mrb[0].mxu0 %v1588
    %v1661 = vpop.f32.mrb[0].mxu0
    %v1662 = vadd.f32 0.0, %v1661
    %v1663 = vpop.f32.mrb[0].mxu0
    %1664 = vdwg.mxu0
    %v1666 = vsel %vm1414, %v1499, 0
    %v1669 = vsel %vm1414, %v1500, 0
    %1671 = vmatprep.subr.mxu0 0.0
    %1672 = vmatpush1.msra.mxu0 %v920
    %1673 = vmatprep.subr.mxu0 0.0
    %1674 = vmatpush1.msra.mxu0 %v925
    %1675 = vmatprep.subr.mxu0 0.0
    %1676 = vmatpush1.msra.mxu0 0.0
    %1677 = vmatprep.subr.mxu0 0.0
    %1678 = vmatpush1.msra.mxu0 0.0
    %1679 = vmatprep.subr.mxu0 0.0
    %1680 = vmatpush1.msra.mxu0 0.0
    %1681 = vmatprep.subr.mxu0 0.0
    %1682 = vmatpush1.msra.mxu0 0.0
    %1683 = vmatprep.subr.mxu0 0.0
    %1684 = vmatpush1.msra.mxu0 0.0
    %1685 = vmatprep.subr.mxu0 0.0
    %1686 = vmatpush1.msra.mxu0 0.0
    %1687 = vmatprep.subr.mxu0 0.0
    %1688 = vmatpush1.msra.mxu0 0.0
    %1689 = vmatprep.subr.mxu0 0.0
    %1690 = vmatpush1.msra.mxu0 0.0
    %1691 = vmatprep.subr.mxu0 0.0
    %1692 = vmatpush1.msra.mxu0 0.0
    %1693 = vmatprep.subr.mxu0 0.0
    %1694 = vmatpush1.msra.mxu0 0.0
    %1695 = vmatprep.subr.mxu0 0.0
    %1696 = vmatpush1.msra.mxu0 0.0
    %1697 = vmatprep.subr.mxu0 0.0
    %1698 = vmatpush1.msra.mxu0 0.0
    %1699 = vmatprep.subr.mxu0 0.0
    %1700 = vmatpush1.msra.mxu0 0.0
    %1701 = vmatprep.subr.mxu0 0.0
    %1702 = vmatpush1.msra.mxu0 0.0
    %1703 = vmatprep.subr.mxu0 0.0
    %1704 = vmatpush1.msra.mxu0 0.0
    %1705 = vmatprep.subr.mxu0 0.0
    %1706 = vmatpush1.msra.mxu0 0.0
    %1707 = vmatprep.subr.mxu0 0.0
    %1708 = vmatpush1.msra.mxu0 0.0
    %1709 = vmatprep.subr.mxu0 0.0
    %1710 = vmatpush1.msra.mxu0 0.0
    %1711 = vmatprep.subr.mxu0 0.0
    %1712 = vmatpush1.msra.mxu0 0.0
    %1713 = vmatprep.subr.mxu0 0.0
    %1714 = vmatpush1.msra.mxu0 0.0
    %1715 = vmatprep.subr.mxu0 0.0
    %1716 = vmatpush1.msra.mxu0 0.0
    %1717 = vmatprep.subr.mxu0 0.0
    %1718 = vmatpush1.msra.mxu0 0.0
    %1719 = vmatprep.subr.mxu0 0.0
    %1720 = vmatpush1.msra.mxu0 0.0
    %1721 = vmatprep.subr.mxu0 0.0
    %1722 = vmatpush1.msra.mxu0 0.0
    %1723 = vmatprep.subr.mxu0 0.0
    %1724 = vmatpush1.msra.mxu0 0.0
    %1725 = vmatprep.subr.mxu0 0.0
    %1726 = vmatpush1.msra.mxu0 0.0
    %1727 = vmatprep.subr.mxu0 0.0
    %1728 = vmatpush1.msra.mxu0 0.0
    %1729 = vmatprep.subr.mxu0 0.0
    %1730 = vmatpush1.msra.mxu0 0.0
    %1731 = vmatprep.subr.mxu0 0.0
    %1732 = vmatpush1.msra.mxu0 0.0
    %1733 = vmatprep.subr.mxu0 0.0
    %1734 = vmatpush1.msra.mxu0 0.0
    %1735 = vmatprep.mubr.f32.mxu0 0.0
    %1736 = vmatmul.mubr.f32.gmra.mrb[0].mxu0 %v1666
    %v1737 = vpop.f32.mrb[0].mxu0
    %v1738 = vadd.f32 0.0, %v1737
    %v1739 = vpop.f32.mrb[0].mxu0
    %1740 = vmatprep.mubr.f32.mxu0 0.0
    %1741 = vmatmul.mubr.f32.gmra.mrb[0].mxu0 %v1669
    %v1742 = vpop.f32.mrb[0].mxu0
    %v1743 = vadd.f32 0.0, %v1742
    %v1744 = vpop.f32.mrb[0].mxu0
    %1745 = vdwg.mxu0
    %v1747 = vsel %vm1414, %v1501, 0
    %v1750 = vsel %vm1414, %v1502, 0
    %1752 = vmatprep.subr.mxu0 0.0
    %1753 = vmatpush1.msra.mxu0 %v995
    %1754 = vmatprep.subr.mxu0 0.0
    %1755 = vmatpush1.msra.mxu0 %v1000
    %1756 = vmatprep.subr.mxu0 0.0
    %1757 = vmatpush1.msra.mxu0 0.0
    %1758 = vmatprep.subr.mxu0 0.0
    %1759 = vmatpush1.msra.mxu0 0.0
    %1760 = vmatprep.subr.mxu0 0.0
    %1761 = vmatpush1.msra.mxu0 0.0
    %1762 = vmatprep.subr.mxu0 0.0
    %1763 = vmatpush1.msra.mxu0 0.0
    %1764 = vmatprep.subr.mxu0 0.0
    %1765 = vmatpush1.msra.mxu0 0.0
    %1766 = vmatprep.subr.mxu0 0.0
    %1767 = vmatpush1.msra.mxu0 0.0
    %1768 = vmatprep.subr.mxu0 0.0
    %1769 = vmatpush1.msra.mxu0 0.0
    %1770 = vmatprep.subr.mxu0 0.0
    %1771 = vmatpush1.msra.mxu0 0.0
    %1772 = vmatprep.subr.mxu0 0.0
    %1773 = vmatpush1.msra.mxu0 0.0
    %1774 = vmatprep.subr.mxu0 0.0
    %1775 = vmatpush1.msra.mxu0 0.0
    %1776 = vmatprep.subr.mxu0 0.0
    %1777 = vmatpush1.msra.mxu0 0.0
    %1778 = vmatprep.subr.mxu0 0.0
    %1779 = vmatpush1.msra.mxu0 0.0
    %1780 = vmatprep.subr.mxu0 0.0
    %1781 = vmatpush1.msra.mxu0 0.0
    %1782 = vmatprep.subr.mxu0 0.0
    %1783 = vmatpush1.msra.mxu0 0.0
    %1784 = vmatprep.subr.mxu0 0.0
    %1785 = vmatpush1.msra.mxu0 0.0
    %1786 = vmatprep.subr.mxu0 0.0
    %1787 = vmatpush1.msra.mxu0 0.0
    %1788 = vmatprep.subr.mxu0 0.0
    %1789 = vmatpush1.msra.mxu0 0.0
    %1790 = vmatprep.subr.mxu0 0.0
    %1791 = vmatpush1.msra.mxu0 0.0
    %1792 = vmatprep.subr.mxu0 0.0
    %1793 = vmatpush1.msra.mxu0 0.0
    %1794 = vmatprep.subr.mxu0 0.0
    %1795 = vmatpush1.msra.mxu0 0.0
    %1796 = vmatprep.subr.mxu0 0.0
    %1797 = vmatpush1.msra.mxu0 0.0
    %1798 = vmatprep.subr.mxu0 0.0
    %1799 = vmatpush1.msra.mxu0 0.0
    %1800 = vmatprep.subr.mxu0 0.0
    %1801 = vmatpush1.msra.mxu0 0.0
    %1802 = vmatprep.subr.mxu0 0.0
    %1803 = vmatpush1.msra.mxu0 0.0
    %1804 = vmatprep.subr.mxu0 0.0
    %1805 = vmatpush1.msra.mxu0 0.0
    %1806 = vmatprep.subr.mxu0 0.0
    %1807 = vmatpush1.msra.mxu0 0.0
    %1808 = vmatprep.subr.mxu0 0.0
    %1809 = vmatpush1.msra.mxu0 0.0
    %1810 = vmatprep.subr.mxu0 0.0
    %1811 = vmatpush1.msra.mxu0 0.0
    %1812 = vmatprep.subr.mxu0 0.0
    %1813 = vmatpush1.msra.mxu0 0.0
    %1814 = vmatprep.subr.mxu0 0.0
    %1815 = vmatpush1.msra.mxu0 0.0
    %1816 = vmatprep.mubr.f32.mxu0 0.0
    %1817 = vmatmul.mubr.f32.gmra.mrb[0].mxu0 %v1747
    %v1818 = vpop.f32.mrb[0].mxu0
    %v1819 = vadd.f32 0.0, %v1818
    %v1820 = vpop.f32.mrb[0].mxu0
    %1821 = vmatprep.mubr.f32.mxu0 0.0
    %1822 = vmatmul.mubr.f32.gmra.mrb[0].mxu0 %v1750
    %v1823 = vpop.f32.mrb[0].mxu0
    %v1824 = vadd.f32 0.0, %v1823
    %v1825 = vpop.f32.mrb[0].mxu0
    %1826 = vdwg.mxu0
    %v1827 = vld [vmem:[%s3] sm:$0xff]
    %v1828 = vld [vmem:[%s3 + $0x8] sm:$0xff]
    %v1829 = vld [vmem:[%s3 + $0x10] sm:$0xff]
    %v1830 = vld [vmem:[%s3 + $0x18] sm:$0xff]
    %v1832 = vsel %vm1049, %v1576, 0
    %v1835 = vsel %vm1049, %v1581, 0
    %1837 = vmatprep.subr.mxu0 0.0
    %1838 = vmatpush1.msra.mxu0 %v1827
    %1839 = vmatprep.subr.mxu0 0.0
    %1840 = vmatpush1.msra.mxu0 0.0
    %1841 = vmatprep.subr.mxu0 0.0
    %1842 = vmatpush1.msra.mxu0 0.0
    %1843 = vmatprep.subr.mxu0 0.0
    %1844 = vmatpush1.msra.mxu0 0.0
    %1845 = vmatprep.subr.mxu0 0.0
    %1846 = vmatpush1.msra.mxu0 0.0
    %1847 = vmatprep.subr.mxu0 0.0
    %1848 = vmatpush1.msra.mxu0 0.0
    %1849 = vmatprep.subr.mxu0 0.0
    %1850 = vmatpush1.msra.mxu0 0.0
    %1851 = vmatprep.subr.mxu0 0.0
    %1852 = vmatpush1.msra.mxu0 0.0
    %1853 = vmatprep.subr.mxu0 0.0
    %1854 = vmatpush1.msra.mxu0 0.0
    %1855 = vmatprep.subr.mxu0 0.0
    %1856 = vmatpush1.msra.mxu0 0.0
    %1857 = vmatprep.subr.mxu0 0.0
    %1858 = vmatpush1.msra.mxu0 0.0
    %1859 = vmatprep.subr.mxu0 0.0
    %1860 = vmatpush1.msra.mxu0 0.0
    %1861 = vmatprep.subr.mxu0 0.0
    %1862 = vmatpush1.msra.mxu0 0.0
    %1863 = vmatprep.subr.mxu0 0.0
    %1864 = vmatpush1.msra.mxu0 0.0
    %1865 = vmatprep.subr.mxu0 0.0
    %1866 = vmatpush1.msra.mxu0 0.0
    %1867 = vmatprep.subr.mxu0 0.0
    %1868 = vmatpush1.msra.mxu0 0.0
    %1869 = vmatprep.subr.mxu0 0.0
    %1870 = vmatpush1.msra.mxu0 0.0
    %1871 = vmatprep.subr.mxu0 0.0
    %1872 = vmatpush1.msra.mxu0 0.0
    %1873 = vmatprep.subr.mxu0 0.0
    %1874 = vmatpush1.msra.mxu0 0.0
    %1875 = vmatprep.subr.mxu0 0.0
    %1876 = vmatpush1.msra.mxu0 0.0
    %1877 = vmatprep.subr.mxu0 0.0
    %1878 = vmatpush1.msra.mxu0 0.0
    %1879 = vmatprep.subr.mxu0 0.0
    %1880 = vmatpush1.msra.mxu0 0.0
    %1881 = vmatprep.subr.mxu0 0.0
    %1882 = vmatpush1.msra.mxu0 0.0
    %1883 = vmatprep.subr.mxu0 0.0
    %1884 = vmatpush1.msra.mxu0 0.0
    %1885 = vmatprep.subr.mxu0 0.0
    %1886 = vmatpush1.msra.mxu0 0.0
    %1887 = vmatprep.subr.mxu0 0.0
    %1888 = vmatpush1.msra.mxu0 0.0
    %1889 = vmatprep.subr.mxu0 0.0
    %1890 = vmatpush1.msra.mxu0 0.0
    %1891 = vmatprep.subr.mxu0 0.0
    %1892 = vmatpush1.msra.mxu0 0.0
    %1893 = vmatprep.subr.mxu0 0.0
    %1894 = vmatpush1.msra.mxu0 0.0
    %1895 = vmatprep.subr.mxu0 0.0
    %1896 = vmatpush1.msra.mxu0 0.0
    %1897 = vmatprep.subr.mxu0 0.0
    %1898 = vmatpush1.msra.mxu0 0.0
    %1899 = vmatprep.subr.mxu0 0.0
    %1900 = vmatpush1.msra.mxu0 0.0
    %1901 = vmatprep.mubr.f32.mxu0 0.0
    %1902 = vmatmul.mubr.f32.gmra.mrb[0].mxu0 %v1832
    %v1903 = vpop.f32.mrb[0].mxu0
    %v1904 = vadd.f32 0.0, %v1903
    %v1905 = vpop.f32.mrb[0].mxu0
    %1906 = vmatprep.mubr.f32.mxu0 0.0
    %1907 = vmatmul.mubr.f32.gmra.mrb[0].mxu0 %v1835
    %v1908 = vpop.f32.mrb[0].mxu0
    %v1909 = vadd.f32 0.0, %v1908
    %v1910 = vpop.f32.mrb[0].mxu0
    %1911 = vdwg.mxu0
    %v1913 = vsel %vm1049, %v1657, 0
    %v1916 = vsel %vm1049, %v1662, 0
    %1918 = vmatprep.subr.mxu0 0.0
    %1919 = vmatpush1.msra.mxu0 %v1828
    %1920 = vmatprep.subr.mxu0 0.0
    %1921 = vmatpush1.msra.mxu0 0.0
    %1922 = vmatprep.subr.mxu0 0.0
    %1923 = vmatpush1.msra.mxu0 0.0
    %1924 = vmatprep.subr.mxu0 0.0
    %1925 = vmatpush1.msra.mxu0 0.0
    %1926 = vmatprep.subr.mxu0 0.0
    %1927 = vmatpush1.msra.mxu0 0.0
    %1928 = vmatprep.subr.mxu0 0.0
    %1929 = vmatpush1.msra.mxu0 0.0
    %1930 = vmatprep.subr.mxu0 0.0
    %1931 = vmatpush1.msra.mxu0 0.0
    %1932 = vmatprep.subr.mxu0 0.0
    %1933 = vmatpush1.msra.mxu0 0.0
    %1934 = vmatprep.subr.mxu0 0.0
    %1935 = vmatpush1.msra.mxu0 0.0
    %1936 = vmatprep.subr.mxu0 0.0
    %1937 = vmatpush1.msra.mxu0 0.0
    %1938 = vmatprep.subr.mxu0 0.0
    %1939 = vmatpush1.msra.mxu0 0.0
    %1940 = vmatprep.subr.mxu0 0.0
    %1941 = vmatpush1.msra.mxu0 0.0
    %1942 = vmatprep.subr.mxu0 0.0
    %1943 = vmatpush1.msra.mxu0 0.0
    %1944 = vmatprep.subr.mxu0 0.0
    %1945 = vmatpush1.msra.mxu0 0.0
    %1946 = vmatprep.subr.mxu0 0.0
    %1947 = vmatpush1.msra.mxu0 0.0
    %1948 = vmatprep.subr.mxu0 0.0
    %1949 = vmatpush1.msra.mxu0 0.0
    %1950 = vmatprep.subr.mxu0 0.0
    %1951 = vmatpush1.msra.mxu0 0.0
    %1952 = vmatprep.subr.mxu0 0.0
    %1953 = vmatpush1.msra.mxu0 0.0
    %1954 = vmatprep.subr.mxu0 0.0
    %1955 = vmatpush1.msra.mxu0 0.0
    %1956 = vmatprep.subr.mxu0 0.0
    %1957 = vmatpush1.msra.mxu0 0.0
    %1958 = vmatprep.subr.mxu0 0.0
    %1959 = vmatpush1.msra.mxu0 0.0
    %1960 = vmatprep.subr.mxu0 0.0
    %1961 = vmatpush1.msra.mxu0 0.0
    %1962 = vmatprep.subr.mxu0 0.0
    %1963 = vmatpush1.msra.mxu0 0.0
    %1964 = vmatprep.subr.mxu0 0.0
    %1965 = vmatpush1.msra.mxu0 0.0
    %1966 = vmatprep.subr.mxu0 0.0
    %1967 = vmatpush1.msra.mxu0 0.0
    %1968 = vmatprep.subr.mxu0 0.0
    %1969 = vmatpush1.msra.mxu0 0.0
    %1970 = vmatprep.subr.mxu0 0.0
    %1971 = vmatpush1.msra.mxu0 0.0
    %1972 = vmatprep.subr.mxu0 0.0
    %1973 = vmatpush1.msra.mxu0 0.0
    %1974 = vmatprep.subr.mxu0 0.0
    %1975 = vmatpush1.msra.mxu0 0.0
    %1976 = vmatprep.subr.mxu0 0.0
    %1977 = vmatpush1.msra.mxu0 0.0
    %1978 = vmatprep.subr.mxu0 0.0
    %1979 = vmatpush1.msra.mxu0 0.0
    %1980 = vmatprep.subr.mxu0 0.0
    %1981 = vmatpush1.msra.mxu0 0.0
    %1982 = vmatprep.mubr.f32.mxu0 0.0
    %1983 = vmatmul.mubr.f32.gmra.mrb[0].mxu0 %v1913
    %v1984 = vpop.f32.mrb[0].mxu0
    %v1985 = vadd.f32 0.0, %v1984
    %v1986 = vpop.f32.mrb[0].mxu0
    %1987 = vmatprep.mubr.f32.mxu0 0.0
    %1988 = vmatmul.mubr.f32.gmra.mrb[0].mxu0 %v1916
    %v1989 = vpop.f32.mrb[0].mxu0
    %v1990 = vadd.f32 0.0, %v1989
    %v1991 = vpop.f32.mrb[0].mxu0
    %1992 = vdwg.mxu0
    %v1994 = vsel %vm1049, %v1738, 0
    %v1997 = vsel %vm1049, %v1743, 0
    %1999 = vmatprep.subr.mxu0 0.0
    %2000 = vmatpush1.msra.mxu0 %v1829
    %2001 = vmatprep.subr.mxu0 0.0
    %2002 = vmatpush1.msra.mxu0 0.0
    %2003 = vmatprep.subr.mxu0 0.0
    %2004 = vmatpush1.msra.mxu0 0.0
    %2005 = vmatprep.subr.mxu0 0.0
    %2006 = vmatpush1.msra.mxu0 0.0
    %2007 = vmatprep.subr.mxu0 0.0
    %2008 = vmatpush1.msra.mxu0 0.0
    %2009 = vmatprep.subr.mxu0 0.0
    %2010 = vmatpush1.msra.mxu0 0.0
    %2011 = vmatprep.subr.mxu0 0.0
    %2012 = vmatpush1.msra.mxu0 0.0
    %2013 = vmatprep.subr.mxu0 0.0
    %2014 = vmatpush1.msra.mxu0 0.0
    %2015 = vmatprep.subr.mxu0 0.0
    %2016 = vmatpush1.msra.mxu0 0.0
    %2017 = vmatprep.subr.mxu0 0.0
    %2018 = vmatpush1.msra.mxu0 0.0
    %2019 = vmatprep.subr.mxu0 0.0
    %2020 = vmatpush1.msra.mxu0 0.0
    %2021 = vmatprep.subr.mxu0 0.0
    %2022 = vmatpush1.msra.mxu0 0.0
    %2023 = vmatprep.subr.mxu0 0.0
    %2024 = vmatpush1.msra.mxu0 0.0
    %2025 = vmatprep.subr.mxu0 0.0
    %2026 = vmatpush1.msra.mxu0 0.0
    %2027 = vmatprep.subr.mxu0 0.0
    %2028 = vmatpush1.msra.mxu0 0.0
    %2029 = vmatprep.subr.mxu0 0.0
    %2030 = vmatpush1.msra.mxu0 0.0
    %2031 = vmatprep.subr.mxu0 0.0
    %2032 = vmatpush1.msra.mxu0 0.0
    %2033 = vmatprep.subr.mxu0 0.0
    %2034 = vmatpush1.msra.mxu0 0.0
    %2035 = vmatprep.subr.mxu0 0.0
    %2036 = vmatpush1.msra.mxu0 0.0
    %2037 = vmatprep.subr.mxu0 0.0
    %2038 = vmatpush1.msra.mxu0 0.0
    %2039 = vmatprep.subr.mxu0 0.0
    %2040 = vmatpush1.msra.mxu0 0.0
    %2041 = vmatprep.subr.mxu0 0.0
    %2042 = vmatpush1.msra.mxu0 0.0
    %2043 = vmatprep.subr.mxu0 0.0
    %2044 = vmatpush1.msra.mxu0 0.0
    %2045 = vmatprep.subr.mxu0 0.0
    %2046 = vmatpush1.msra.mxu0 0.0
    %2047 = vmatprep.subr.mxu0 0.0
    %2048 = vmatpush1.msra.mxu0 0.0
    %2049 = vmatprep.subr.mxu0 0.0
    %2050 = vmatpush1.msra.mxu0 0.0
    %2051 = vmatprep.subr.mxu0 0.0
    %2052 = vmatpush1.msra.mxu0 0.0
    %2053 = vmatprep.subr.mxu0 0.0
    %2054 = vmatpush1.msra.mxu0 0.0
    %2055 = vmatprep.subr.mxu0 0.0
    %2056 = vmatpush1.msra.mxu0 0.0
    %2057 = vmatprep.subr.mxu0 0.0
    %2058 = vmatpush1.msra.mxu0 0.0
    %2059 = vmatprep.subr.mxu0 0.0
    %2060 = vmatpush1.msra.mxu0 0.0
    %2061 = vmatprep.subr.mxu0 0.0
    %2062 = vmatpush1.msra.mxu0 0.0
    %2063 = vmatprep.mubr.f32.mxu0 0.0
    %2064 = vmatmul.mubr.f32.gmra.mrb[0].mxu0 %v1994
    %v2065 = vpop.f32.mrb[0].mxu0
    %v2066 = vadd.f32 0.0, %v2065
    %v2067 = vpop.f32.mrb[0].mxu0
    %2068 = vmatprep.mubr.f32.mxu0 0.0
    %2069 = vmatmul.mubr.f32.gmra.mrb[0].mxu0 %v1997
    %v2070 = vpop.f32.mrb[0].mxu0
    %v2071 = vadd.f32 0.0, %v2070
    %v2072 = vpop.f32.mrb[0].mxu0
    %2073 = vdwg.mxu0
    %v2075 = vsel %vm1049, %v1819, 0
    %v2078 = vsel %vm1049, %v1824, 0
    %2080 = vmatprep.subr.mxu0 0.0
    %2081 = vmatpush1.msra.mxu0 %v1830
    %2082 = vmatprep.subr.mxu0 0.0
    %2083 = vmatpush1.msra.mxu0 0.0
    %2084 = vmatprep.subr.mxu0 0.0
    %2085 = vmatpush1.msra.mxu0 0.0
    %2086 = vmatprep.subr.mxu0 0.0
    %2087 = vmatpush1.msra.mxu0 0.0
    %2088 = vmatprep.subr.mxu0 0.0
    %2089 = vmatpush1.msra.mxu0 0.0
    %2090 = vmatprep.subr.mxu0 0.0
    %2091 = vmatpush1.msra.mxu0 0.0
    %2092 = vmatprep.subr.mxu0 0.0
    %2093 = vmatpush1.msra.mxu0 0.0
    %2094 = vmatprep.subr.mxu0 0.0
    %2095 = vmatpush1.msra.mxu0 0.0
    %2096 = vmatprep.subr.mxu0 0.0
    %2097 = vmatpush1.msra.mxu0 0.0
    %2098 = vmatprep.subr.mxu0 0.0
    %2099 = vmatpush1.msra.mxu0 0.0
    %2100 = vmatprep.subr.mxu0 0.0
    %2101 = vmatpush1.msra.mxu0 0.0
    %2102 = vmatprep.subr.mxu0 0.0
    %2103 = vmatpush1.msra.mxu0 0.0
    %2104 = vmatprep.subr.mxu0 0.0
    %2105 = vmatpush1.msra.mxu0 0.0
    %2106 = vmatprep.subr.mxu0 0.0
    %2107 = vmatpush1.msra.mxu0 0.0
    %2108 = vmatprep.subr.mxu0 0.0
    %2109 = vmatpush1.msra.mxu0 0.0
    %2110 = vmatprep.subr.mxu0 0.0
    %2111 = vmatpush1.msra.mxu0 0.0
    %2112 = vmatprep.subr.mxu0 0.0
    %2113 = vmatpush1.msra.mxu0 0.0
    %2114 = vmatprep.subr.mxu0 0.0
    %2115 = vmatpush1.msra.mxu0 0.0
    %2116 = vmatprep.subr.mxu0 0.0
    %2117 = vmatpush1.msra.mxu0 0.0
    %2118 = vmatprep.subr.mxu0 0.0
    %2119 = vmatpush1.msra.mxu0 0.0
    %2120 = vmatprep.subr.mxu0 0.0
    %2121 = vmatpush1.msra.mxu0 0.0
    %2122 = vmatprep.subr.mxu0 0.0
    %2123 = vmatpush1.msra.mxu0 0.0
    %2124 = vmatprep.subr.mxu0 0.0
    %2125 = vmatpush1.msra.mxu0 0.0
    %2126 = vmatprep.subr.mxu0 0.0
    %2127 = vmatpush1.msra.mxu0 0.0
    %2128 = vmatprep.subr.mxu0 0.0
    %2129 = vmatpush1.msra.mxu0 0.0
    %2130 = vmatprep.subr.mxu0 0.0
    %2131 = vmatpush1.msra.mxu0 0.0
    %2132 = vmatprep.subr.mxu0 0.0
    %2133 = vmatpush1.msra.mxu0 0.0
    %2134 = vmatprep.subr.mxu0 0.0
    %2135 = vmatpush1.msra.mxu0 0.0
    %2136 = vmatprep.subr.mxu0 0.0
    %2137 = vmatpush1.msra.mxu0 0.0
    %2138 = vmatprep.subr.mxu0 0.0
    %2139 = vmatpush1.msra.mxu0 0.0
    %2140 = vmatprep.subr.mxu0 0.0
    %2141 = vmatpush1.msra.mxu0 0.0
    %2142 = vmatprep.subr.mxu0 0.0
    %2143 = vmatpush1.msra.mxu0 0.0
    %2144 = vmatprep.mubr.f32.mxu0 0.0
    %2145 = vmatmul.mubr.f32.gmra.mrb[0].mxu0 %v2075
    %v2146 = vpop.f32.mrb[0].mxu0
    %v2147 = vadd.f32 0.0, %v2146
    %v2148 = vpop.f32.mrb[0].mxu0
    %2149 = vmatprep.mubr.f32.mxu0 0.0
    %2150 = vmatmul.mubr.f32.gmra.mrb[0].mxu0 %v2078
    %v2151 = vpop.f32.mrb[0].mxu0
    %v2152 = vadd.f32 0.0, %v2151
    %v2153 = vpop.f32.mrb[0].mxu0
    %2154 = vdwg.mxu0
    %v2155 = vsel %vm96, %v1904, 0.0
    %v2156 = vsel %vm96, %v1985, 0.0
    %v2157 = vadd.f32 %v2155, %v2156
    %v2158 = vsel %vm96, %v2066, 0.0
    %v2159 = vadd.f32 %v2157, %v2158
    %v2160 = vsel %vm96, %v2147, 0.0
    %v2161 = vadd.f32 %v2159, %v2160
    %v2162 = vsel %vm96, %v1909, 0.0
    %v2163 = vsel %vm96, %v1990, 0.0
    %v2164 = vadd.f32 %v2162, %v2163
    %v2165 = vsel %vm96, %v2071, 0.0
    %v2166 = vadd.f32 %v2164, %v2165
    %v2167 = vsel %vm96, %v2152, 0.0
    %v2168 = vadd.f32 %v2166, %v2167
    %v2169 = vadd.f32 %v2161, %v46
    %v2170 = vadd.f32 %v2168, %v47
    %v2171 = vld [vmem:[%s4] sm:$0x1]
    %v2172 = vld [vmem:[%s5] sm:$0x1]
    %v2173 = vsel %vm96, %v2169, 0.0
    %2174 = vadd.xlane.f32.xlu0 %v2173
    %v2175 = vpop.xlane.xlu0 %2174
    %v2176 = vsel %vm96, %v2170, 0.0
    %2177 = vadd.xlane.f32.xlu0 %v2176
    %v2178 = vpop.xlane.xlu0 %2177
    %v2179 = vrcp.pop 32.0
    %v2180 = vmul.f32 %v2175, %v2179
    %v2181 = vmul.f32 %v2178, %v2179
    %v2182 = vsub.f32 %v2169, %v2180
    %v2183 = vsub.f32 %v2170, %v2181
    %v2184 = vmul.f32 %v2182, %v2182
    %v2185 = vmul.f32 %v2183, %v2183
    %v2186 = vsel %vm96, %v2184, 0.0
    %2187 = vadd.xlane.f32.xlu0 %v2186
    %v2188 = vpop.xlane.xlu0 %2187
    %v2189 = vsel %vm96, %v2185, 0.0
    %2190 = vadd.xlane.f32.xlu0 %v2189
    %v2191 = vpop.xlane.xlu0 %2190
    %v2192 = vmul.f32 %v2188, %v2179
    %v2193 = vmul.f32 %v2191, %v2179
    %v2194 = vadd.f32 %v2192, 1e-05
    %v2195 = vadd.f32 %v2193, 1e-05
    %v2196 = vrsqrt.pop %v2194
    %v2197 = vrsqrt.pop %v2195
    %v2198 = vmul.f32 %v2182, %v2196
    %v2199 = vmul.f32 %v2183, %v2197
    %v2201 = vlaneseq
    %v2202 = vshrl.u32 %v2201, 7
    %v2203 = vsub.s32 0, %v2202
    %v2204 = vrot.slane %v2171, %v2203
    %v2206 = vmul.f32 %v2198, %v2204
    %v2207 = vmul.f32 %v2199, %v2204
    %v2209 = vlaneseq
    %v2210 = vshrl.u32 %v2209, 7
    %v2211 = vsub.s32 0, %v2210
    %v2212 = vrot.slane %v2172, %v2211
    %v2214 = vadd.f32 %v2206, %v2212
    %v2215 = vadd.f32 %v2207, %v2212
    %v2216 = vld [vmem:[%s6] sm:$0xff]
    %v2217 = vld [vmem:[%s6 + $0x8] sm:$0xff]
    %v2218 = vld [vmem:[%s6 + $0x10] sm:$0xff]
    %v2219 = vld [vmem:[%s6 + $0x18] sm:$0xff]
    %v2220 = vld [vmem:[%s7] sm:$0x1]
    %v2222 = vlaneseq
    %v2223 = vshrl.u32 %v2222, 7
    %v2224 = vsub.s32 0, %v2223
    %v2225 = vrot.slane %v2220, %v2224
    %v2228 = vsel %vm96, %v2214, 0
    %v2231 = vsel %vm96, %v2215, 0
    %2233 = vmatprep.subr.mxu0 0.0
    %2234 = vmatpush1.msra.mxu0 %v2216
    %2235 = vmatprep.subr.mxu0 0.0
    %2236 = vmatpush1.msra.mxu0 %v2217
    %2237 = vmatprep.subr.mxu0 0.0
    %2238 = vmatpush1.msra.mxu0 %v2218
    %2239 = vmatprep.subr.mxu0 0.0
    %2240 = vmatpush1.msra.mxu0 %v2219
    %2241 = vmatprep.subr.mxu0 0.0
    %2242 = vmatpush1.msra.mxu0 0.0
    %2243 = vmatprep.subr.mxu0 0.0
    %2244 = vmatpush1.msra.mxu0 0.0
    %2245 = vmatprep.subr.mxu0 0.0
    %2246 = vmatpush1.msra.mxu0 0.0
    %2247 = vmatprep.subr.mxu0 0.0
    %2248 = vmatpush1.msra.mxu0 0.0
    %2249 = vmatprep.subr.mxu0 0.0
    %2250 = vmatpush1.msra.mxu0 0.0
    %2251 = vmatprep.subr.mxu0 0.0
    %2252 = vmatpush1.msra.mxu0 0.0
    %2253 = vmatprep.subr.mxu0 0.0
    %2254 = vmatpush1.msra.mxu0 0.0
    %2255 = vmatprep.subr.mxu0 0.0
    %2256 = vmatpush1.msra.mxu0 0.0
    %2257 = vmatprep.subr.mxu0 0.0
    %2258 = vmatpush1.msra.mxu0 0.0
    %2259 = vmatprep.subr.mxu0 0.0
    %2260 = vmatpush1.msra.mxu0 0.0
    %2261 = vmatprep.subr.mxu0 0.0
    %2262 = vmatpush1.msra.mxu0 0.0
    %2263 = vmatprep.subr.mxu0 0.0
    %2264 = vmatpush1.msra.mxu0 0.0
    %2265 = vmatprep.subr.mxu0 0.0
    %2266 = vmatpush1.msra.mxu0 0.0
    %2267 = vmatprep.subr.mxu0 0.0
    %2268 = vmatpush1.msra.mxu0 0.0
    %2269 = vmatprep.subr.mxu0 0.0
    %2270 = vmatpush1.msra.mxu0 0.0
    %2271 = vmatprep.subr.mxu0 0.0
    %2272 = vmatpush1.msra.mxu0 0.0
    %2273 = vmatprep.subr.mxu0 0.0
    %2274 = vmatpush1.msra.mxu0 0.0
    %2275 = vmatprep.subr.mxu0 0.0
    %2276 = vmatpush1.msra.mxu0 0.0
    %2277 = vmatprep.subr.mxu0 0.0
    %2278 = vmatpush1.msra.mxu0 0.0
    %2279 = vmatprep.subr.mxu0 0.0
    %2280 = vmatpush1.msra.mxu0 0.0
    %2281 = vmatprep.subr.mxu0 0.0
    %2282 = vmatpush1.msra.mxu0 0.0
    %2283 = vmatprep.subr.mxu0 0.0
    %2284 = vmatpush1.msra.mxu0 0.0
    %2285 = vmatprep.subr.mxu0 0.0
    %2286 = vmatpush1.msra.mxu0 0.0
    %2287 = vmatprep.subr.mxu0 0.0
    %2288 = vmatpush1.msra.mxu0 0.0
    %2289 = vmatprep.subr.mxu0 0.0
    %2290 = vmatpush1.msra.mxu0 0.0
    %2291 = vmatprep.subr.mxu0 0.0
    %2292 = vmatpush1.msra.mxu0 0.0
    %2293 = vmatprep.subr.mxu0 0.0
    %2294 = vmatpush1.msra.mxu0 0.0
    %2295 = vmatprep.subr.mxu0 0.0
    %2296 = vmatpush1.msra.mxu0 0.0
    %2297 = vmatprep.mubr.f32.mxu0 0.0
    %2298 = vmatmul.mubr.f32.gmra.mrb[0].mxu0 %v2228
    %v2299 = vpop.f32.mrb[0].mxu0
    %v2300 = vadd.f32 %v2225, %v2299
    %v2301 = vpop.f32.mrb[0].mxu0
    %2302 = vmatprep.mubr.f32.mxu0 0.0
    %2303 = vmatmul.mubr.f32.gmra.mrb[0].mxu0 %v2231
    %v2304 = vpop.f32.mrb[0].mxu0
    %v2305 = vadd.f32 %v2225, %v2304
    %v2306 = vpop.f32.mrb[0].mxu0
    %2307 = vdwg.mxu0
    %v2308 = vmax.f32 %v2300, 0.0
    %v2309 = vmax.f32 %v2305, 0.0
    %v2310 = vld [vmem:[%s8] sm:$0xff]
    %v2311 = vld [vmem:[%s8 + $0x8] sm:$0xff]
    %v2312 = vld [vmem:[%s8 + $0x10] sm:$0xff]
    %v2313 = vld [vmem:[%s8 + $0x18] sm:$0xff]
    %v2314 = vld [vmem:[%s8 + $0x20] sm:$0xff]
    %v2315 = vld [vmem:[%s8 + $0x28] sm:$0xff]
    %v2316 = vld [vmem:[%s8 + $0x30] sm:$0xff]
    %v2317 = vld [vmem:[%s8 + $0x38] sm:$0xff]
    %v2318 = vld [vmem:[%s9] sm:$0x1]
    %v2320 = vlaneseq
    %v2321 = vshrl.u32 %v2320, 7
    %v2322 = vsub.s32 0, %v2321
    %v2323 = vrot.slane %v2318, %v2322
    %vm2325 = vcmask 523264
    %v2327 = vsel %vm2325, %v2308, 0
    %v2330 = vsel %vm2325, %v2309, 0
    %2332 = vmatprep.subr.mxu0 0.0
    %2333 = vmatpush1.msra.mxu0 %v2310
    %2334 = vmatprep.subr.mxu0 0.0
    %2335 = vmatpush1.msra.mxu0 %v2311
    %2336 = vmatprep.subr.mxu0 0.0
    %2337 = vmatpush1.msra.mxu0 %v2312
    %2338 = vmatprep.subr.mxu0 0.0
    %2339 = vmatpush1.msra.mxu0 %v2313
    %2340 = vmatprep.subr.mxu0 0.0
    %2341 = vmatpush1.msra.mxu0 %v2314
    %2342 = vmatprep.subr.mxu0 0.0
    %2343 = vmatpush1.msra.mxu0 %v2315
    %2344 = vmatprep.subr.mxu0 0.0
    %2345 = vmatpush1.msra.mxu0 %v2316
    %2346 = vmatprep.subr.mxu0 0.0
    %2347 = vmatpush1.msra.mxu0 %v2317
    %2348 = vmatprep.subr.mxu0 0.0
    %2349 = vmatpush1.msra.mxu0 0.0
    %2350 = vmatprep.subr.mxu0 0.0
    %2351 = vmatpush1.msra.mxu0 0.0
    %2352 = vmatprep.subr.mxu0 0.0
    %2353 = vmatpush1.msra.mxu0 0.0
    %2354 = vmatprep.subr.mxu0 0.0
    %2355 = vmatpush1.msra.mxu0 0.0
    %2356 = vmatprep.subr.mxu0 0.0
    %2357 = vmatpush1.msra.mxu0 0.0
    %2358 = vmatprep.subr.mxu0 0.0
    %2359 = vmatpush1.msra.mxu0 0.0
    %2360 = vmatprep.subr.mxu0 0.0
    %2361 = vmatpush1.msra.mxu0 0.0
    %2362 = vmatprep.subr.mxu0 0.0
    %2363 = vmatpush1.msra.mxu0 0.0
    %2364 = vmatprep.subr.mxu0 0.0
    %2365 = vmatpush1.msra.mxu0 0.0
    %2366 = vmatprep.subr.mxu0 0.0
    %2367 = vmatpush1.msra.mxu0 0.0
    %2368 = vmatprep.subr.mxu0 0.0
    %2369 = vmatpush1.msra.mxu0 0.0
    %2370 = vmatprep.subr.mxu0 0.0
    %2371 = vmatpush1.msra.mxu0 0.0
    %2372 = vmatprep.subr.mxu0 0.0
    %2373 = vmatpush1.msra.mxu0 0.0
    %2374 = vmatprep.subr.mxu0 0.0
    %2375 = vmatpush1.msra.mxu0 0.0
    %2376 = vmatprep.subr.mxu0 0.0
    %2377 = vmatpush1.msra.mxu0 0.0
    %2378 = vmatprep.subr.mxu0 0.0
    %2379 = vmatpush1.msra.mxu0 0.0
    %2380 = vmatprep.subr.mxu0 0.0
    %2381 = vmatpush1.msra.mxu0 0.0
    %2382 = vmatprep.subr.mxu0 0.0
    %2383 = vmatpush1.msra.mxu0 0.0
    %2384 = vmatprep.subr.mxu0 0.0
    %2385 = vmatpush1.msra.mxu0 0.0
    %2386 = vmatprep.subr.mxu0 0.0
    %2387 = vmatpush1.msra.mxu0 0.0
    %2388 = vmatprep.subr.mxu0 0.0
    %2389 = vmatpush1.msra.mxu0 0.0
    %2390 = vmatprep.subr.mxu0 0.0
    %2391 = vmatpush1.msra.mxu0 0.0
    %2392 = vmatprep.subr.mxu0 0.0
    %2393 = vmatpush1.msra.mxu0 0.0
    %2394 = vmatprep.subr.mxu0 0.0
    %2395 = vmatpush1.msra.mxu0 0.0
    %2396 = vmatprep.mubr.f32.mxu0 0.0
    %2397 = vmatmul.mubr.f32.gmra.mrb[0].mxu0 %v2327
    %v2398 = vpop.f32.mrb[0].mxu0
    %v2399 = vadd.f32 %v2323, %v2398
    %v2400 = vpop.f32.mrb[0].mxu0
    %2401 = vmatprep.mubr.f32.mxu0 0.0
    %2402 = vmatmul.mubr.f32.gmra.mrb[0].mxu0 %v2330
    %v2403 = vpop.f32.mrb[0].mxu0
    %v2404 = vadd.f32 %v2323, %v2403
    %v2405 = vpop.f32.mrb[0].mxu0
    %2406 = vdwg.mxu0
    %v2407 = vadd.f32 %v2399, %v2214
    %v2408 = vadd.f32 %v2404, %v2215
    %v2409 = vld [vmem:[%s10] sm:$0x1]
    %v2410 = vld [vmem:[%s11] sm:$0x1]
    %v2411 = vsel %vm96, %v2407, 0.0
    %2412 = vadd.xlane.f32.xlu0 %v2411
    %v2413 = vpop.xlane.xlu0 %2412
    %v2414 = vsel %vm96, %v2408, 0.0
    %2415 = vadd.xlane.f32.xlu0 %v2414
    %v2416 = vpop.xlane.xlu0 %2415
    %v2417 = vmul.f32 %v2413, %v2179
    %v2418 = vmul.f32 %v2416, %v2179
    %v2419 = vsub.f32 %v2407, %v2417
    %v2420 = vsub.f32 %v2408, %v2418
    %v2421 = vmul.f32 %v2419, %v2419
    %v2422 = vmul.f32 %v2420, %v2420
    %v2423 = vsel %vm96, %v2421, 0.0
    %2424 = vadd.xlane.f32.xlu0 %v2423
    %v2425 = vpop.xlane.xlu0 %2424
    %v2426 = vsel %vm96, %v2422, 0.0
    %2427 = vadd.xlane.f32.xlu0 %v2426
    %v2428 = vpop.xlane.xlu0 %2427
    %v2429 = vmul.f32 %v2425, %v2179
    %v2430 = vmul.f32 %v2428, %v2179
    %v2431 = vadd.f32 %v2429, 1e-05
    %v2432 = vadd.f32 %v2430, 1e-05
    %v2433 = vrsqrt.pop %v2431
    %v2434 = vrsqrt.pop %v2432
    %v2435 = vmul.f32 %v2419, %v2433
    %v2436 = vmul.f32 %v2420, %v2434
    %v2438 = vlaneseq
    %v2439 = vshrl.u32 %v2438, 7
    %v2440 = vsub.s32 0, %v2439
    %v2441 = vrot.slane %v2409, %v2440
    %v2443 = vmul.f32 %v2435, %v2441
    %v2444 = vmul.f32 %v2436, %v2441
    %v2446 = vlaneseq
    %v2447 = vshrl.u32 %v2446, 7
    %v2448 = vsub.s32 0, %v2447
    %v2449 = vrot.slane %v2410, %v2448
    %v2451 = vadd.f32 %v2443, %v2449
    %v2452 = vadd.f32 %v2444, %v2449
    %2453 = vst.msk [vmem:[#allocation4] sm:$0xff] %vm96, %v2451
    %2454 = vst.msk [vmem:[#allocation4 + $0x8] sm:$0xff] %vm96, %v2452
    // Predicated region
    $region46: #{tpu_custom_call.1} parent=1 // pred_check
      _
    $region47: #{tpu_custom_call.1} parent=1 // pred_check_branch
      %2456 = sbr.rel (0) target = $region49
    $region48: #{tpu_custom_call.1} parent=1 // pred_region
      %s2458 = ssub.s32 256, 256
      %2459 = vsyncadd [#allocation5], %s2458
      %s2460 = sshll.u32 [#allocation4], 4
      %s2461 = int_to_ptr.vmem [resolvable:$true] %s2460
      %2466 = dma.vmem_to_hbm [thread:$0]  %s2461, 256, %s12, [#allocation5], 128, 128, 8
    $region49: #{tpu_custom_call.1} parent=1 // pred_fallthru
      _
    // Predicated region
    $region50: #{tpu_custom_call.1} parent=1 // pred_check
      _
    $region51: #{tpu_custom_call.1} parent=1 // pred_check_branch
      %2468 = sbr.rel (0) target = $region53
    $region52: #{tpu_custom_call.1} parent=1 // pred_region
      %2469 = dma.done [#allocation5], 256
    $region53: #{tpu_custom_call.1} parent=1 // pred_fallthru
      _
    %2470 = vsyncpa [#allocation5], 1

</llo_original>
